<compile_context>
chip_gen: v5e
topology: v5e:2x2
jax: 0.10.0
libtpu: 0.0.40
codegen_flags: <defaults>
</compile_context>

<pallas_src>
import jax
import jax.numpy as jnp
from jax import lax
from jax.experimental import pallas as pl
from jax.experimental.pallas import tpu as pltpu

# ---------------- configuration (small shapes consistent with the module) ----
BATCH = 2
IN_CHANNEL = 3
SEQ_LENS = 80
TIME_LENS = 10
WINDOW = SEQ_LENS // TIME_LENS        # 8   (sequence_lens % time_lens == 0)
HIDDEN = 32
OUTPUT = 2
CONV_OUT = 2                          # SubConvNet out_channel
KSIZE = 3                             # SubConvNet Conv1d kernel (padding=1)
INPUT_SIZE = CONV_OUT * WINDOW        # adaptive feature size = 16
FC1 = 128
ROWS_PAD = 8                          # padded rows per time slab (>= B*C, sublane tile)


# ---------------- fused kernel -------------------------------------------------
def pretrain_fused_kernel(xw_ref, conv_w_ref, conv_b_ref,
                          wih_c0_ref, wih_c1_ref, whh_f_ref, b_cat_ref,
                          w1_ref, b1_ref, w2_ref, b2_ref,
                          o_ref, zx_ref):
    """Whole PretrainNet forward in one kernel.

    xw_ref   : (T*P, W+2) f32  zero-padded window rows, time-major, P=8 rows per
                               time slab (row = t*P + b*C + c; rows >= B*C are 0)
    conv_w   : (CONV_OUT*KSIZE,) f32 SMEM, conv_b: (CONV_OUT,) f32 SMEM
    wih_c0/1 : (W, 8H) bf16   LSTM input weights for conv-ch0 / conv-ch1 rows,
                              cols 0:4H forward dir / 4H:8H reverse dir,
                              i/f/o gate columns pre-scaled by 0.5 host-side
    whh_f    : (H, 4H) bf16   forward recurrent weights (same 0.5 fold)
    b_cat    : (1, 8H) f32    [b_ih+b_hh, fwd | rev], same 0.5 fold
    w1       : (2H, FC1) f32  b1: (1, FC1)   w2: (FC1, OUT)  b2: (1, OUT)
    o_ref    : (B, OUT) f32   softmax probabilities
    zx_ref   : VMEM (T*P, 8H) f32   hoisted x @ W_ih for both directions
    """
    f32 = jnp.float32
    bf16 = jnp.bfloat16
    T = TIME_LENS
    W = xw_ref.shape[1] - 2                 # 8
    P = xw_ref.shape[0] // T                # 8 (tile-aligned slab height)
    H = HIDDEN
    H4 = 4 * H
    B = o_ref.shape[0]                      # 2
    C = IN_CHANNEL                          # 3

    # ---- SubConvNet: Conv1d(1 -> 2, k=3, pad=1) + ReLU on every window row --
    # Window dimension is already zero-padded by the wrapper: one load, taps
    # are static lane slices of the in-register value (no scratch, no stores).
    xp = xw_ref[...]                        # (T*P, W+2)
    xl = xp[:, 0:W]                         # x[j-1]  (0 at j = 0)
    xc = xp[:, 1:W + 1]                     # x[j]
    xr = xp[:, 2:W + 2]                     # x[j+1]  (0 at j = W-1)
    c0 = jnp.maximum(conv_b_ref[0] + conv_w_ref[0] * xl
                     + conv_w_ref[1] * xc + conv_w_ref[2] * xr, 0.0)
    c1 = jnp.maximum(conv_b_ref[1] + conv_w_ref[3] * xl
                     + conv_w_ref[4] * xc + conv_w_ref[5] * xr, 0.0)

    # ---- hoisted LSTM input projection (both directions, bias folded in) ----
    # bf16 MXU operands, f32 accumulation. Weights arrive pre-cast / pre-scaled.
    zx_ref[...] = (
        jnp.dot(c0.astype(bf16), wih_c0_ref[...], preferred_element_type=f32)
        + jnp.dot(c1.astype(bf16), wih_c1_ref[...], preferred_element_type=f32)
        + b_cat_ref[...])

    # ---- bidirectional LSTM (1 layer); only output[-1] is consumed ----------
    whh_bf = whh_f_ref[...]                 # (H, 4H) bf16, resident across the loop

    # The 0.5 pre-scale of the i/f/o gates is folded into the parameters, so a
    # single tanh over all 4H gate columns is exact:
    #   sigmoid(pre) = 0.5*(1 + tanh(pre/2)) ; g gate = tanh(pre).
    def gates(z):
        th = jnp.tanh(z)                            # one EUP op over 4H cols
        return (0.5 * (th[:, 0:H] + 1.0),           # i
                0.5 * (th[:, H:2 * H] + 1.0),       # f
                th[:, 2 * H:3 * H],                 # g
                0.5 * (th[:, 3 * H:4 * H] + 1.0))   # o

    h = jnp.zeros((P, H), f32)
    c = jnp.zeros((P, H), f32)
    for t in range(T):                      # static unroll (T = 10)
        # (8, 128) tile-aligned slab load + single-pass bf16 MXU recurrent dot.
        z = zx_ref[t * P:(t + 1) * P, 0:H4] + jnp.dot(
            h.astype(bf16), whh_bf, preferred_element_type=f32)
        i_g, f_g, g_g, o_g = gates(z)
        c = f_g * c + i_g * g_g
        h = o_g * jnp.tanh(c)

    # Reverse direction at the last time step == one cell step on x[T-1] from
    # h_0 = c_0 = 0, so the h @ W_hh_reverse term vanishes (W_hh_reverse unused).
    z_b = zx_ref[(T - 1) * P:T * P, H4:2 * H4]
    i_b, _f_b, g_b, o_b = gates(z_b)
    h_b = o_b * jnp.tanh(i_b * g_b)

    # ---- head: channel avg-pool + Linear + ReLU + Linear + softmax ----------
    # output[-1] = [h | h_b]  (rows ordered b*C + c inside each slab).  Feed the
    # two halves through w1's row blocks (avoids a concatenate) and fold the
    # channel mean into a (B, P) pooling matmul (mean commutes with the linear
    # layer); pad rows (cols >= B*C) get weight 0 so their garbage never leaks.
    row = lax.broadcasted_iota(jnp.int32, (B, P), 0)
    col = lax.broadcasted_iota(jnp.int32, (B, P), 1)
    pool = jnp.where((col >= row * C) & (col < (row + 1) * C),
                     1.0 / C, 0.0).astype(f32)

    pre1 = (jnp.dot(h, w1_ref[0:H, :], preferred_element_type=f32)
            + jnp.dot(h_b, w1_ref[H:2 * H, :], preferred_element_type=f32))
    h1 = jnp.maximum(jnp.dot(pool, pre1, preferred_element_type=f32)
                     + b1_ref[...], 0.0)                         # ReLU(fn1)
    logits = jnp.dot(h1, w2_ref[...], preferred_element_type=f32) + b2_ref[...]
    m = jnp.max(logits, axis=-1, keepdims=True)
    e = jnp.exp(logits - m)
    o_ref[...] = e / jnp.sum(e, axis=-1, keepdims=True)          # exact softmax


# ---------------- wrapper ------------------------------------------------------
def pretrain_net_forward(x, params):
    B, C, L = x.shape
    T = TIME_LENS
    W = L // T
    BC = B * C
    P = ROWS_PAD

    # torch: chunk(T, dim=2) + stack(dim=2) + reshape(B*C*T, 1, W) == reshape.
    # Rows are reordered time-major (t, b, c) and each time slab is padded from
    # B*C=6 to P=8 rows (one sublane tile) so every LSTM step reads a tile-
    # aligned (8, 128) slab inside the kernel.  The window dimension is zero-
    # padded here (W+2) so the conv taps need no in-kernel scratch.  This is
    # the only wrapper-side work, on ~3 KB of input.
    xw = (x.astype(jnp.float32)
           .reshape(B, C, T, W)
           .transpose(2, 0, 1, 3)
           .reshape(T, BC, W))
    xw_pad = jnp.zeros((T, P, W + 2), jnp.float32)
    xw_pad = xw_pad.at[:, :BC, 1:W + 1].set(xw).reshape(T * P, W + 2)

    vmem = pl.BlockSpec(memory_space=pltpu.MemorySpace.VMEM)
    smem = pl.BlockSpec(memory_space=pltpu.MemorySpace.SMEM)

    probs = pl.pallas_call(
        pretrain_fused_kernel,
        in_specs=[vmem,            # padded window rows
                  smem, smem,      # conv weights / bias (scalars)
                  vmem, vmem, vmem, vmem,      # wih_c0, wih_c1, whh_f, b_cat
                  vmem, vmem, vmem, vmem],     # w1, b1, w2, b2
        out_specs=vmem,
        out_shape=jax.ShapeDtypeStruct((B, OUTPUT), jnp.float32),
        scratch_shapes=[
            pltpu.VMEM((T * P, 8 * HIDDEN), jnp.float32),   # hoisted x @ W_ih
        ],
    )(xw_pad,
      params["conv_w"], params["conv_b"],
      params["wih_c0"], params["wih_c1"], params["whh_f"], params["b_cat"],
      params["w1"], params["b1"], params["w2"], params["b2"])
    # params["whh_b"] is intentionally not consumed: the reverse-direction
    # output at the last time step starts from h_0 = c_0 = 0.

    # TODO(synk): the reference forward returns `(x, tx)` but `tx` is undefined
    # in the provided source; only the softmax probabilities are returned here.
    return probs


def init_params(key):
    ks = jax.random.split(key, 10)
    s = 0.1
    H = HIDDEN
    H4 = 4 * H
    W = WINDOW

    # ---- raw (PyTorch-layout-equivalent) parameters --------------------------
    # TODO(synk): SubConvNet is not defined in the provided source; it is
    # realized here as Conv1d(1->2, k=3, pad=1) + ReLU (matches INPUT_SIZE=2*W).
    conv_w = s * jax.random.normal(ks[0], (CONV_OUT * KSIZE,), jnp.float32)
    conv_b = s * jax.random.normal(ks[1], (CONV_OUT,), jnp.float32)
    # LSTM input weights (both directions concatenated): cols 0:4H forward,
    # 4H:8H reverse; gate order i,f,g,o inside each 4H block (PyTorch).
    # Row r < W multiplies conv-channel-0 feature r; row W+r conv-channel-1.
    wih = s * jax.random.normal(ks[2], (INPUT_SIZE, 2 * H4), jnp.float32)
    whh_f = s * jax.random.normal(ks[3], (H, H4), jnp.float32)
    # b_cat = [b_ih_f + b_hh_f | b_ih_r + b_hh_r]  (biases folded)
    b_cat = s * jax.random.normal(ks[4], (1, 2 * H4), jnp.float32)
    # Part of nn.LSTM but mathematically unused for output[-1] of the
    # reverse direction (single step from zero state).
    whh_b = s * jax.random.normal(ks[5], (H, H4), jnp.float32)
    w1 = s * jax.random.normal(ks[6], (2 * H, FC1), jnp.float32)
    b1 = s * jax.random.normal(ks[7], (1, FC1), jnp.float32)
    w2 = s * jax.random.normal(ks[8], (FC1, OUTPUT), jnp.float32)
    b2 = s * jax.random.normal(ks[9], (1, OUTPUT), jnp.float32)

    # ---- one-time prep: fold the sigmoid 0.5 pre-scale into the i/f/o gate
    # columns (exact identity sigmoid(x) = 0.5*(1 + tanh(x/2))), and pre-cast
    # the MXU weight operands to bf16 (f32 accumulation in-kernel). -----------
    gate_scale_4h = jnp.concatenate([
        jnp.full((2 * H,), 0.5, jnp.float32),    # i, f
        jnp.ones((H,), jnp.float32),             # g
        jnp.full((H,), 0.5, jnp.float32)])       # o
    gate_scale_8h = jnp.concatenate([gate_scale_4h, gate_scale_4h])

    wih_s = wih * gate_scale_8h[None, :]
    return {
        "conv_w": conv_w,
        "conv_b": conv_b,
        "wih_c0": wih_s[0:W, :].astype(jnp.bfloat16),       # (W, 8H)
        "wih_c1": wih_s[W:2 * W, :].astype(jnp.bfloat16),   # (W, 8H)
        "whh_f": (whh_f * gate_scale_4h[None, :]).astype(jnp.bfloat16),
        "b_cat": b_cat * gate_scale_8h[None, :],
        "whh_b": whh_b,     # unused (see note in wrapper)
        "w1": w1, "b1": b1, "w2": w2, "b2": b2,
    }


if __name__ == "__main__":
    key = jax.random.PRNGKey(0)
    kx, kp = jax.random.split(key)
    x = jax.random.normal(kx, (BATCH, IN_CHANNEL, SEQ_LENS), jnp.float32)
    params = init_params(kp)

    out = jax.jit(pretrain_net_forward)(x, params)
    jax.block_until_ready(out)
    assert out.shape == (BATCH, OUTPUT)
    assert bool(jnp.all(jnp.isfinite(out)))
    assert bool(jnp.allclose(jnp.sum(out, axis=-1), 1.0, atol=1e-4))
    print("KERNEL_OK")
</pallas_src>

<mosaic_0001>
module attributes {stable_mosaic.version = 11 : i64} {
  func.func @pretrain_fused_kernel(%arg0: memref<80x10xf32, #tpu.memory_space<vmem>>, %arg1: memref<6xf32, #tpu.memory_space<smem>>, %arg2: memref<2xf32, #tpu.memory_space<smem>>, %arg3: memref<8x256xbf16, #tpu.memory_space<vmem>>, %arg4: memref<8x256xbf16, #tpu.memory_space<vmem>>, %arg5: memref<32x128xbf16, #tpu.memory_space<vmem>>, %arg6: memref<1x256xf32, #tpu.memory_space<vmem>>, %arg7: memref<64x128xf32, #tpu.memory_space<vmem>>, %arg8: memref<1x128xf32, #tpu.memory_space<vmem>>, %arg9: memref<128x2xf32, #tpu.memory_space<vmem>>, %arg10: memref<1x2xf32, #tpu.memory_space<vmem>>, %arg11: memref<2x2xf32, #tpu.memory_space<vmem>>, %arg12: memref<80x256xf32, #tpu.memory_space<vmem>>) attributes {dimension_semantics = [], scalar_prefetch = 0 : i64, scratch_operands = 1 : i64, tpu.core_type = #tpu.core_type<tc>} {
    %c0 = arith.constant 0 : index
    %c0_0 = arith.constant 0 : index
    %0 = vector.load %arg0[%c0, %c0_0] : memref<80x10xf32, #tpu.memory_space<vmem>>, vector<80x10xf32>
    %1 = vector.extract_strided_slice %0 {offsets = [0, 0], sizes = [80, 8], strides = [1, 1]} : vector<80x10xf32> to vector<80x8xf32>
    %2 = vector.extract_strided_slice %0 {offsets = [0, 1], sizes = [80, 8], strides = [1, 1]} : vector<80x10xf32> to vector<80x8xf32>
    %3 = vector.extract_strided_slice %0 {offsets = [0, 2], sizes = [80, 8], strides = [1, 1]} : vector<80x10xf32> to vector<80x8xf32>
    %c0_1 = arith.constant 0 : index
    %4 = memref.load %arg2[%c0_1] : memref<2xf32, #tpu.memory_space<smem>>
    %c0_2 = arith.constant 0 : index
    %5 = memref.load %arg1[%c0_2] : memref<6xf32, #tpu.memory_space<smem>>
    %6 = vector.broadcast %5 : f32 to vector<80x8xf32>
    %7 = arith.mulf %6, %1 : vector<80x8xf32>
    %8 = vector.broadcast %4 : f32 to vector<80x8xf32>
    %9 = arith.addf %8, %7 : vector<80x8xf32>
    %c1 = arith.constant 1 : index
    %10 = memref.load %arg1[%c1] : memref<6xf32, #tpu.memory_space<smem>>
    %11 = vector.broadcast %10 : f32 to vector<80x8xf32>
    %12 = arith.mulf %11, %2 : vector<80x8xf32>
    %13 = arith.addf %9, %12 : vector<80x8xf32>
    %c2 = arith.constant 2 : index
    %14 = memref.load %arg1[%c2] : memref<6xf32, #tpu.memory_space<smem>>
    %15 = vector.broadcast %14 : f32 to vector<80x8xf32>
    %16 = arith.mulf %15, %3 : vector<80x8xf32>
    %17 = arith.addf %13, %16 : vector<80x8xf32>
    %cst = arith.constant 0.000000e+00 : f32
    %18 = vector.broadcast %cst : f32 to vector<80x8xf32>
    %19 = arith.maximumf %17, %18 : vector<80x8xf32>
    %c1_3 = arith.constant 1 : index
    %20 = memref.load %arg2[%c1_3] : memref<2xf32, #tpu.memory_space<smem>>
    %c3 = arith.constant 3 : index
    %21 = memref.load %arg1[%c3] : memref<6xf32, #tpu.memory_space<smem>>
    %22 = vector.broadcast %21 : f32 to vector<80x8xf32>
    %23 = arith.mulf %22, %1 : vector<80x8xf32>
    %24 = vector.broadcast %20 : f32 to vector<80x8xf32>
    %25 = arith.addf %24, %23 : vector<80x8xf32>
    %c4 = arith.constant 4 : index
    %26 = memref.load %arg1[%c4] : memref<6xf32, #tpu.memory_space<smem>>
    %27 = vector.broadcast %26 : f32 to vector<80x8xf32>
    %28 = arith.mulf %27, %2 : vector<80x8xf32>
    %29 = arith.addf %25, %28 : vector<80x8xf32>
    %c5 = arith.constant 5 : index
    %30 = memref.load %arg1[%c5] : memref<6xf32, #tpu.memory_space<smem>>
    %31 = vector.broadcast %30 : f32 to vector<80x8xf32>
    %32 = arith.mulf %31, %3 : vector<80x8xf32>
    %33 = arith.addf %29, %32 : vector<80x8xf32>
    %cst_4 = arith.constant 0.000000e+00 : f32
    %34 = vector.broadcast %cst_4 : f32 to vector<80x8xf32>
    %35 = arith.maximumf %33, %34 : vector<80x8xf32>
    %36 = arith.truncf %19 : vector<80x8xf32> to vector<80x8xbf16>
    %c0_5 = arith.constant 0 : index
    %c0_6 = arith.constant 0 : index
    %37 = vector.load %arg3[%c0_5, %c0_6] : memref<8x256xbf16, #tpu.memory_space<vmem>>, vector<8x256xbf16>
    %cst_7 = arith.constant dense<0.000000e+00> : vector<80x256xf32>
    %38 = tpu.matmul %36, %37, %cst_7 {dimension_numbers = #tpu.dot_dimension_numbers<[1], [0], [0], [1], [0, 0, 1, 1], [], []>} : vector<80x8xbf16>, vector<8x256xbf16>, vector<80x256xf32> -> vector<80x256xf32>
    %39 = arith.truncf %35 : vector<80x8xf32> to vector<80x8xbf16>
    %c0_8 = arith.constant 0 : index
    %c0_9 = arith.constant 0 : index
    %40 = vector.load %arg4[%c0_8, %c0_9] : memref<8x256xbf16, #tpu.memory_space<vmem>>, vector<8x256xbf16>
    %cst_10 = arith.constant dense<0.000000e+00> : vector<80x256xf32>
    %41 = tpu.matmul %39, %40, %cst_10 {dimension_numbers = #tpu.dot_dimension_numbers<[1], [0], [0], [1], [0, 0, 1, 1], [], []>} : vector<80x8xbf16>, vector<8x256xbf16>, vector<80x256xf32> -> vector<80x256xf32>
    %42 = arith.addf %38, %41 : vector<80x256xf32>
    %c0_11 = arith.constant 0 : index
    %c0_12 = arith.constant 0 : index
    %43 = vector.load %arg6[%c0_11, %c0_12] : memref<1x256xf32, #tpu.memory_space<vmem>>, vector<1x256xf32>
    %44 = vector.broadcast %43 : vector<1x256xf32> to vector<80x256xf32>
    %45 = arith.addf %42, %44 : vector<80x256xf32>
    %c0_13 = arith.constant 0 : index
    %c0_14 = arith.constant 0 : index
    %46 = vector.load %arg12[%c0_13, %c0_14] : memref<80x256xf32, #tpu.memory_space<vmem>>, vector<80x256xf32>
    tpu.vector_store %arg12[%c0_13, %c0_14], %45 {strides = array<i32>} : memref<80x256xf32, #tpu.memory_space<vmem>>, vector<80x256xf32>,
    %c0_15 = arith.constant 0 : index
    %c0_16 = arith.constant 0 : index
    %47 = vector.load %arg5[%c0_15, %c0_16] : memref<32x128xbf16, #tpu.memory_space<vmem>>, vector<32x128xbf16>
    %cst_17 = arith.constant 0.000000e+00 : f32
    %48 = vector.broadcast %cst_17 : f32 to vector<8x32xf32>
    %cst_18 = arith.constant 0.000000e+00 : f32
    %49 = vector.broadcast %cst_18 : f32 to vector<8x32xf32>
    %c0_19 = arith.constant 0 : index
    %c0_20 = arith.constant 0 : index
    %50 = vector.load %arg12[%c0_19, %c0_20] : memref<80x256xf32, #tpu.memory_space<vmem>>, vector<8x128xf32>
    %51 = arith.truncf %48 : vector<8x32xf32> to vector<8x32xbf16>
    %cst_21 = arith.constant dense<0.000000e+00> : vector<8x128xf32>
    %52 = tpu.matmul %51, %47, %cst_21 {dimension_numbers = #tpu.dot_dimension_numbers<[1], [0], [0], [1], [0, 0, 1, 1], [], []>} : vector<8x32xbf16>, vector<32x128xbf16>, vector<8x128xf32> -> vector<8x128xf32>
    %53 = arith.addf %50, %52 : vector<8x128xf32>
    %54 = math.tanh %53 : vector<8x128xf32>
    %55 = vector.extract_strided_slice %54 {offsets = [0, 0], sizes = [8, 32], strides = [1, 1]} : vector<8x128xf32> to vector<8x32xf32>
    %cst_22 = arith.constant 1.000000e+00 : f32
    %56 = vector.broadcast %cst_22 : f32 to vector<8x32xf32>
    %57 = arith.addf %55, %56 : vector<8x32xf32>
    %cst_23 = arith.constant 5.000000e-01 : f32
    %58 = vector.broadcast %cst_23 : f32 to vector<8x32xf32>
    %59 = arith.mulf %58, %57 : vector<8x32xf32>
    %60 = vector.extract_strided_slice %54 {offsets = [0, 32], sizes = [8, 32], strides = [1, 1]} : vector<8x128xf32> to vector<8x32xf32>
    %cst_24 = arith.constant 1.000000e+00 : f32
    %61 = vector.broadcast %cst_24 : f32 to vector<8x32xf32>
    %62 = arith.addf %60, %61 : vector<8x32xf32>
    %cst_25 = arith.constant 5.000000e-01 : f32
    %63 = vector.broadcast %cst_25 : f32 to vector<8x32xf32>
    %64 = arith.mulf %63, %62 : vector<8x32xf32>
    %65 = vector.extract_strided_slice %54 {offsets = [0, 64], sizes = [8, 32], strides = [1, 1]} : vector<8x128xf32> to vector<8x32xf32>
    %66 = vector.extract_strided_slice %54 {offsets = [0, 96], sizes = [8, 32], strides = [1, 1]} : vector<8x128xf32> to vector<8x32xf32>
    %cst_26 = arith.constant 1.000000e+00 : f32
    %67 = vector.broadcast %cst_26 : f32 to vector<8x32xf32>
    %68 = arith.addf %66, %67 : vector<8x32xf32>
    %cst_27 = arith.constant 5.000000e-01 : f32
    %69 = vector.broadcast %cst_27 : f32 to vector<8x32xf32>
    %70 = arith.mulf %69, %68 : vector<8x32xf32>
    %71 = arith.mulf %64, %49 : vector<8x32xf32>
    %72 = arith.mulf %59, %65 : vector<8x32xf32>
    %73 = arith.addf %71, %72 : vector<8x32xf32>
    %74 = math.tanh %73 : vector<8x32xf32>
    %75 = arith.mulf %70, %74 : vector<8x32xf32>
    %c8 = arith.constant 8 : index
    %c0_28 = arith.constant 0 : index
    %76 = vector.load %arg12[%c8, %c0_28] : memref<80x256xf32, #tpu.memory_space<vmem>>, vector<8x128xf32>
    %77 = arith.truncf %75 : vector<8x32xf32> to vector<8x32xbf16>
    %cst_29 = arith.constant dense<0.000000e+00> : vector<8x128xf32>
    %78 = tpu.matmul %77, %47, %cst_29 {dimension_numbers = #tpu.dot_dimension_numbers<[1], [0], [0], [1], [0, 0, 1, 1], [], []>} : vector<8x32xbf16>, vector<32x128xbf16>, vector<8x128xf32> -> vector<8x128xf32>
    %79 = arith.addf %76, %78 : vector<8x128xf32>
    %80 = math.tanh %79 : vector<8x128xf32>
    %81 = vector.extract_strided_slice %80 {offsets = [0, 0], sizes = [8, 32], strides = [1, 1]} : vector<8x128xf32> to vector<8x32xf32>
    %cst_30 = arith.constant 1.000000e+00 : f32
    %82 = vector.broadcast %cst_30 : f32 to vector<8x32xf32>
    %83 = arith.addf %81, %82 : vector<8x32xf32>
    %cst_31 = arith.constant 5.000000e-01 : f32
    %84 = vector.broadcast %cst_31 : f32 to vector<8x32xf32>
    %85 = arith.mulf %84, %83 : vector<8x32xf32>
    %86 = vector.extract_strided_slice %80 {offsets = [0, 32], sizes = [8, 32], strides = [1, 1]} : vector<8x128xf32> to vector<8x32xf32>
    %cst_32 = arith.constant 1.000000e+00 : f32
    %87 = vector.broadcast %cst_32 : f32 to vector<8x32xf32>
    %88 = arith.addf %86, %87 : vector<8x32xf32>
    %cst_33 = arith.constant 5.000000e-01 : f32
    %89 = vector.broadcast %cst_33 : f32 to vector<8x32xf32>
    %90 = arith.mulf %89, %88 : vector<8x32xf32>
    %91 = vector.extract_strided_slice %80 {offsets = [0, 64], sizes = [8, 32], strides = [1, 1]} : vector<8x128xf32> to vector<8x32xf32>
    %92 = vector.extract_strided_slice %80 {offsets = [0, 96], sizes = [8, 32], strides = [1, 1]} : vector<8x128xf32> to vector<8x32xf32>
    %cst_34 = arith.constant 1.000000e+00 : f32
    %93 = vector.broadcast %cst_34 : f32 to vector<8x32xf32>
    %94 = arith.addf %92, %93 : vector<8x32xf32>
    %cst_35 = arith.constant 5.000000e-01 : f32
    %95 = vector.broadcast %cst_35 : f32 to vector<8x32xf32>
    %96 = arith.mulf %95, %94 : vector<8x32xf32>
    %97 = arith.mulf %90, %73 : vector<8x32xf32>
    %98 = arith.mulf %85, %91 : vector<8x32xf32>
    %99 = arith.addf %97, %98 : vector<8x32xf32>
    %100 = math.tanh %99 : vector<8x32xf32>
    %101 = arith.mulf %96, %100 : vector<8x32xf32>
    %c16 = arith.constant 16 : index
    %c0_36 = arith.constant 0 : index
    %102 = vector.load %arg12[%c16, %c0_36] : memref<80x256xf32, #tpu.memory_space<vmem>>, vector<8x128xf32>
    %103 = arith.truncf %101 : vector<8x32xf32> to vector<8x32xbf16>
    %cst_37 = arith.constant dense<0.000000e+00> : vector<8x128xf32>
    %104 = tpu.matmul %103, %47, %cst_37 {dimension_numbers = #tpu.dot_dimension_numbers<[1], [0], [0], [1], [0, 0, 1, 1], [], []>} : vector<8x32xbf16>, vector<32x128xbf16>, vector<8x128xf32> -> vector<8x128xf32>
    %105 = arith.addf %102, %104 : vector<8x128xf32>
    %106 = math.tanh %105 : vector<8x128xf32>
    %107 = vector.extract_strided_slice %106 {offsets = [0, 0], sizes = [8, 32], strides = [1, 1]} : vector<8x128xf32> to vector<8x32xf32>
    %cst_38 = arith.constant 1.000000e+00 : f32
    %108 = vector.broadcast %cst_38 : f32 to vector<8x32xf32>
    %109 = arith.addf %107, %108 : vector<8x32xf32>
    %cst_39 = arith.constant 5.000000e-01 : f32
    %110 = vector.broadcast %cst_39 : f32 to vector<8x32xf32>
    %111 = arith.mulf %110, %109 : vector<8x32xf32>
    %112 = vector.extract_strided_slice %106 {offsets = [0, 32], sizes = [8, 32], strides = [1, 1]} : vector<8x128xf32> to vector<8x32xf32>
    %cst_40 = arith.constant 1.000000e+00 : f32
    %113 = vector.broadcast %cst_40 : f32 to vector<8x32xf32>
    %114 = arith.addf %112, %113 : vector<8x32xf32>
    %cst_41 = arith.constant 5.000000e-01 : f32
    %115 = vector.broadcast %cst_41 : f32 to vector<8x32xf32>
    %116 = arith.mulf %115, %114 : vector<8x32xf32>
    %117 = vector.extract_strided_slice %106 {offsets = [0, 64], sizes = [8, 32], strides = [1, 1]} : vector<8x128xf32> to vector<8x32xf32>
    %118 = vector.extract_strided_slice %106 {offsets = [0, 96], sizes = [8, 32], strides = [1, 1]} : vector<8x128xf32> to vector<8x32xf32>
    %cst_42 = arith.constant 1.000000e+00 : f32
    %119 = vector.broadcast %cst_42 : f32 to vector<8x32xf32>
    %120 = arith.addf %118, %119 : vector<8x32xf32>
    %cst_43 = arith.constant 5.000000e-01 : f32
    %121 = vector.broadcast %cst_43 : f32 to vector<8x32xf32>
    %122 = arith.mulf %121, %120 : vector<8x32xf32>
    %123 = arith.mulf %116, %99 : vector<8x32xf32>
    %124 = arith.mulf %111, %117 : vector<8x32xf32>
    %125 = arith.addf %123, %124 : vector<8x32xf32>
    %126 = math.tanh %125 : vector<8x32xf32>
    %127 = arith.mulf %122, %126 : vector<8x32xf32>
    %c24 = arith.constant 24 : index
    %c0_44 = arith.constant 0 : index
    %128 = vector.load %arg12[%c24, %c0_44] : memref<80x256xf32, #tpu.memory_space<vmem>>, vector<8x128xf32>
    %129 = arith.truncf %127 : vector<8x32xf32> to vector<8x32xbf16>
    %cst_45 = arith.constant dense<0.000000e+00> : vector<8x128xf32>
    %130 = tpu.matmul %129, %47, %cst_45 {dimension_numbers = #tpu.dot_dimension_numbers<[1], [0], [0], [1], [0, 0, 1, 1], [], []>} : vector<8x32xbf16>, vector<32x128xbf16>, vector<8x128xf32> -> vector<8x128xf32>
    %131 = arith.addf %128, %130 : vector<8x128xf32>
    %132 = math.tanh %131 : vector<8x128xf32>
    %133 = vector.extract_strided_slice %132 {offsets = [0, 0], sizes = [8, 32], strides = [1, 1]} : vector<8x128xf32> to vector<8x32xf32>
    %cst_46 = arith.constant 1.000000e+00 : f32
    %134 = vector.broadcast %cst_46 : f32 to vector<8x32xf32>
    %135 = arith.addf %133, %134 : vector<8x32xf32>
    %cst_47 = arith.constant 5.000000e-01 : f32
    %136 = vector.broadcast %cst_47 : f32 to vector<8x32xf32>
    %137 = arith.mulf %136, %135 : vector<8x32xf32>
    %138 = vector.extract_strided_slice %132 {offsets = [0, 32], sizes = [8, 32], strides = [1, 1]} : vector<8x128xf32> to vector<8x32xf32>
    %cst_48 = arith.constant 1.000000e+00 : f32
    %139 = vector.broadcast %cst_48 : f32 to vector<8x32xf32>
    %140 = arith.addf %138, %139 : vector<8x32xf32>
    %cst_49 = arith.constant 5.000000e-01 : f32
    %141 = vector.broadcast %cst_49 : f32 to vector<8x32xf32>
    %142 = arith.mulf %141, %140 : vector<8x32xf32>
    %143 = vector.extract_strided_slice %132 {offsets = [0, 64], sizes = [8, 32], strides = [1, 1]} : vector<8x128xf32> to vector<8x32xf32>
    %144 = vector.extract_strided_slice %132 {offsets = [0, 96], sizes = [8, 32], strides = [1, 1]} : vector<8x128xf32> to vector<8x32xf32>
    %cst_50 = arith.constant 1.000000e+00 : f32
    %145 = vector.broadcast %cst_50 : f32 to vector<8x32xf32>
    %146 = arith.addf %144, %145 : vector<8x32xf32>
    %cst_51 = arith.constant 5.000000e-01 : f32
    %147 = vector.broadcast %cst_51 : f32 to vector<8x32xf32>
    %148 = arith.mulf %147, %146 : vector<8x32xf32>
    %149 = arith.mulf %142, %125 : vector<8x32xf32>
    %150 = arith.mulf %137, %143 : vector<8x32xf32>
    %151 = arith.addf %149, %150 : vector<8x32xf32>
    %152 = math.tanh %151 : vector<8x32xf32>
    %153 = arith.mulf %148, %152 : vector<8x32xf32>
    %c32 = arith.constant 32 : index
    %c0_52 = arith.constant 0 : index
    %154 = vector.load %arg12[%c32, %c0_52] : memref<80x256xf32, #tpu.memory_space<vmem>>, vector<8x128xf32>
    %155 = arith.truncf %153 : vector<8x32xf32> to vector<8x32xbf16>
    %cst_53 = arith.constant dense<0.000000e+00> : vector<8x128xf32>
    %156 = tpu.matmul %155, %47, %cst_53 {dimension_numbers = #tpu.dot_dimension_numbers<[1], [0], [0], [1], [0, 0, 1, 1], [], []>} : vector<8x32xbf16>, vector<32x128xbf16>, vector<8x128xf32> -> vector<8x128xf32>
    %157 = arith.addf %154, %156 : vector<8x128xf32>
    %158 = math.tanh %157 : vector<8x128xf32>
    %159 = vector.extract_strided_slice %158 {offsets = [0, 0], sizes = [8, 32], strides = [1, 1]} : vector<8x128xf32> to vector<8x32xf32>
    %cst_54 = arith.constant 1.000000e+00 : f32
    %160 = vector.broadcast %cst_54 : f32 to vector<8x32xf32>
    %161 = arith.addf %159, %160 : vector<8x32xf32>
    %cst_55 = arith.constant 5.000000e-01 : f32
    %162 = vector.broadcast %cst_55 : f32 to vector<8x32xf32>
    %163 = arith.mulf %162, %161 : vector<8x32xf32>
    %164 = vector.extract_strided_slice %158 {offsets = [0, 32], sizes = [8, 32], strides = [1, 1]} : vector<8x128xf32> to vector<8x32xf32>
    %cst_56 = arith.constant 1.000000e+00 : f32
    %165 = vector.broadcast %cst_56 : f32 to vector<8x32xf32>
    %166 = arith.addf %164, %165 : vector<8x32xf32>
    %cst_57 = arith.constant 5.000000e-01 : f32
    %167 = vector.broadcast %cst_57 : f32 to vector<8x32xf32>
    %168 = arith.mulf %167, %166 : vector<8x32xf32>
    %169 = vector.extract_strided_slice %158 {offsets = [0, 64], sizes = [8, 32], strides = [1, 1]} : vector<8x128xf32> to vector<8x32xf32>
    %170 = vector.extract_strided_slice %158 {offsets = [0, 96], sizes = [8, 32], strides = [1, 1]} : vector<8x128xf32> to vector<8x32xf32>
    %cst_58 = arith.constant 1.000000e+00 : f32
    %171 = vector.broadcast %cst_58 : f32 to vector<8x32xf32>
    %172 = arith.addf %170, %171 : vector<8x32xf32>
    %cst_59 = arith.constant 5.000000e-01 : f32
    %173 = vector.broadcast %cst_59 : f32 to vector<8x32xf32>
    %174 = arith.mulf %173, %172 : vector<8x32xf32>
    %175 = arith.mulf %168, %151 : vector<8x32xf32>
    %176 = arith.mulf %163, %169 : vector<8x32xf32>
    %177 = arith.addf %175, %176 : vector<8x32xf32>
    %178 = math.tanh %177 : vector<8x32xf32>
    %179 = arith.mulf %174, %178 : vector<8x32xf32>
    %c40 = arith.constant 40 : index
    %c0_60 = arith.constant 0 : index
    %180 = vector.load %arg12[%c40, %c0_60] : memref<80x256xf32, #tpu.memory_space<vmem>>, vector<8x128xf32>
    %181 = arith.truncf %179 : vector<8x32xf32> to vector<8x32xbf16>
    %cst_61 = arith.constant dense<0.000000e+00> : vector<8x128xf32>
    %182 = tpu.matmul %181, %47, %cst_61 {dimension_numbers = #tpu.dot_dimension_numbers<[1], [0], [0], [1], [0, 0, 1, 1], [], []>} : vector<8x32xbf16>, vector<32x128xbf16>, vector<8x128xf32> -> vector<8x128xf32>
    %183 = arith.addf %180, %182 : vector<8x128xf32>
    %184 = math.tanh %183 : vector<8x128xf32>
    %185 = vector.extract_strided_slice %184 {offsets = [0, 0], sizes = [8, 32], strides = [1, 1]} : vector<8x128xf32> to vector<8x32xf32>
    %cst_62 = arith.constant 1.000000e+00 : f32
    %186 = vector.broadcast %cst_62 : f32 to vector<8x32xf32>
    %187 = arith.addf %185, %186 : vector<8x32xf32>
    %cst_63 = arith.constant 5.000000e-01 : f32
    %188 = vector.broadcast %cst_63 : f32 to vector<8x32xf32>
    %189 = arith.mulf %188, %187 : vector<8x32xf32>
    %190 = vector.extract_strided_slice %184 {offsets = [0, 32], sizes = [8, 32], strides = [1, 1]} : vector<8x128xf32> to vector<8x32xf32>
    %cst_64 = arith.constant 1.000000e+00 : f32
    %191 = vector.broadcast %cst_64 : f32 to vector<8x32xf32>
    %192 = arith.addf %190, %191 : vector<8x32xf32>
    %cst_65 = arith.constant 5.000000e-01 : f32
    %193 = vector.broadcast %cst_65 : f32 to vector<8x32xf32>
    %194 = arith.mulf %193, %192 : vector<8x32xf32>
    %195 = vector.extract_strided_slice %184 {offsets = [0, 64], sizes = [8, 32], strides = [1, 1]} : vector<8x128xf32> to vector<8x32xf32>
    %196 = vector.extract_strided_slice %184 {offsets = [0, 96], sizes = [8, 32], strides = [1, 1]} : vector<8x128xf32> to vector<8x32xf32>
    %cst_66 = arith.constant 1.000000e+00 : f32
    %197 = vector.broadcast %cst_66 : f32 to vector<8x32xf32>
    %198 = arith.addf %196, %197 : vector<8x32xf32>
    %cst_67 = arith.constant 5.000000e-01 : f32
    %199 = vector.broadcast %cst_67 : f32 to vector<8x32xf32>
    %200 = arith.mulf %199, %198 : vector<8x32xf32>
    %201 = arith.mulf %194, %177 : vector<8x32xf32>
    %202 = arith.mulf %189, %195 : vector<8x32xf32>
    %203 = arith.addf %201, %202 : vector<8x32xf32>
    %204 = math.tanh %203 : vector<8x32xf32>
    %205 = arith.mulf %200, %204 : vector<8x32xf32>
    %c48 = arith.constant 48 : index
    %c0_68 = arith.constant 0 : index
    %206 = vector.load %arg12[%c48, %c0_68] : memref<80x256xf32, #tpu.memory_space<vmem>>, vector<8x128xf32>
    %207 = arith.truncf %205 : vector<8x32xf32> to vector<8x32xbf16>
    %cst_69 = arith.constant dense<0.000000e+00> : vector<8x128xf32>
    %208 = tpu.matmul %207, %47, %cst_69 {dimension_numbers = #tpu.dot_dimension_numbers<[1], [0], [0], [1], [0, 0, 1, 1], [], []>} : vector<8x32xbf16>, vector<32x128xbf16>, vector<8x128xf32> -> vector<8x128xf32>
    %209 = arith.addf %206, %208 : vector<8x128xf32>
    %210 = math.tanh %209 : vector<8x128xf32>
    %211 = vector.extract_strided_slice %210 {offsets = [0, 0], sizes = [8, 32], strides = [1, 1]} : vector<8x128xf32> to vector<8x32xf32>
    %cst_70 = arith.constant 1.000000e+00 : f32
    %212 = vector.broadcast %cst_70 : f32 to vector<8x32xf32>
    %213 = arith.addf %211, %212 : vector<8x32xf32>
    %cst_71 = arith.constant 5.000000e-01 : f32
    %214 = vector.broadcast %cst_71 : f32 to vector<8x32xf32>
    %215 = arith.mulf %214, %213 : vector<8x32xf32>
    %216 = vector.extract_strided_slice %210 {offsets = [0, 32], sizes = [8, 32], strides = [1, 1]} : vector<8x128xf32> to vector<8x32xf32>
    %cst_72 = arith.constant 1.000000e+00 : f32
    %217 = vector.broadcast %cst_72 : f32 to vector<8x32xf32>
    %218 = arith.addf %216, %217 : vector<8x32xf32>
    %cst_73 = arith.constant 5.000000e-01 : f32
    %219 = vector.broadcast %cst_73 : f32 to vector<8x32xf32>
    %220 = arith.mulf %219, %218 : vector<8x32xf32>
    %221 = vector.extract_strided_slice %210 {offsets = [0, 64], sizes = [8, 32], strides = [1, 1]} : vector<8x128xf32> to vector<8x32xf32>
    %222 = vector.extract_strided_slice %210 {offsets = [0, 96], sizes = [8, 32], strides = [1, 1]} : vector<8x128xf32> to vector<8x32xf32>
    %cst_74 = arith.constant 1.000000e+00 : f32
    %223 = vector.broadcast %cst_74 : f32 to vector<8x32xf32>
    %224 = arith.addf %222, %223 : vector<8x32xf32>
    %cst_75 = arith.constant 5.000000e-01 : f32
    %225 = vector.broadcast %cst_75 : f32 to vector<8x32xf32>
    %226 = arith.mulf %225, %224 : vector<8x32xf32>
    %227 = arith.mulf %220, %203 : vector<8x32xf32>
    %228 = arith.mulf %215, %221 : vector<8x32xf32>
    %229 = arith.addf %227, %228 : vector<8x32xf32>
    %230 = math.tanh %229 : vector<8x32xf32>
    %231 = arith.mulf %226, %230 : vector<8x32xf32>
    %c56 = arith.constant 56 : index
    %c0_76 = arith.constant 0 : index
    %232 = vector.load %arg12[%c56, %c0_76] : memref<80x256xf32, #tpu.memory_space<vmem>>, vector<8x128xf32>
    %233 = arith.truncf %231 : vector<8x32xf32> to vector<8x32xbf16>
    %cst_77 = arith.constant dense<0.000000e+00> : vector<8x128xf32>
    %234 = tpu.matmul %233, %47, %cst_77 {dimension_numbers = #tpu.dot_dimension_numbers<[1], [0], [0], [1], [0, 0, 1, 1], [], []>} : vector<8x32xbf16>, vector<32x128xbf16>, vector<8x128xf32> -> vector<8x128xf32>
    %235 = arith.addf %232, %234 : vector<8x128xf32>
    %236 = math.tanh %235 : vector<8x128xf32>
    %237 = vector.extract_strided_slice %236 {offsets = [0, 0], sizes = [8, 32], strides = [1, 1]} : vector<8x128xf32> to vector<8x32xf32>
    %cst_78 = arith.constant 1.000000e+00 : f32
    %238 = vector.broadcast %cst_78 : f32 to vector<8x32xf32>
    %239 = arith.addf %237, %238 : vector<8x32xf32>
    %cst_79 = arith.constant 5.000000e-01 : f32
    %240 = vector.broadcast %cst_79 : f32 to vector<8x32xf32>
    %241 = arith.mulf %240, %239 : vector<8x32xf32>
    %242 = vector.extract_strided_slice %236 {offsets = [0, 32], sizes = [8, 32], strides = [1, 1]} : vector<8x128xf32> to vector<8x32xf32>
    %cst_80 = arith.constant 1.000000e+00 : f32
    %243 = vector.broadcast %cst_80 : f32 to vector<8x32xf32>
    %244 = arith.addf %242, %243 : vector<8x32xf32>
    %cst_81 = arith.constant 5.000000e-01 : f32
    %245 = vector.broadcast %cst_81 : f32 to vector<8x32xf32>
    %246 = arith.mulf %245, %244 : vector<8x32xf32>
    %247 = vector.extract_strided_slice %236 {offsets = [0, 64], sizes = [8, 32], strides = [1, 1]} : vector<8x128xf32> to vector<8x32xf32>
    %248 = vector.extract_strided_slice %236 {offsets = [0, 96], sizes = [8, 32], strides = [1, 1]} : vector<8x128xf32> to vector<8x32xf32>
    %cst_82 = arith.constant 1.000000e+00 : f32
    %249 = vector.broadcast %cst_82 : f32 to vector<8x32xf32>
    %250 = arith.addf %248, %249 : vector<8x32xf32>
    %cst_83 = arith.constant 5.000000e-01 : f32
    %251 = vector.broadcast %cst_83 : f32 to vector<8x32xf32>
    %252 = arith.mulf %251, %250 : vector<8x32xf32>
    %253 = arith.mulf %246, %229 : vector<8x32xf32>
    %254 = arith.mulf %241, %247 : vector<8x32xf32>
    %255 = arith.addf %253, %254 : vector<8x32xf32>
    %256 = math.tanh %255 : vector<8x32xf32>
    %257 = arith.mulf %252, %256 : vector<8x32xf32>
    %c64 = arith.constant 64 : index
    %c0_84 = arith.constant 0 : index
    %258 = vector.load %arg12[%c64, %c0_84] : memref<80x256xf32, #tpu.memory_space<vmem>>, vector<8x128xf32>
    %259 = arith.truncf %257 : vector<8x32xf32> to vector<8x32xbf16>
    %cst_85 = arith.constant dense<0.000000e+00> : vector<8x128xf32>
    %260 = tpu.matmul %259, %47, %cst_85 {dimension_numbers = #tpu.dot_dimension_numbers<[1], [0], [0], [1], [0, 0, 1, 1], [], []>} : vector<8x32xbf16>, vector<32x128xbf16>, vector<8x128xf32> -> vector<8x128xf32>
    %261 = arith.addf %258, %260 : vector<8x128xf32>
    %262 = math.tanh %261 : vector<8x128xf32>
    %263 = vector.extract_strided_slice %262 {offsets = [0, 0], sizes = [8, 32], strides = [1, 1]} : vector<8x128xf32> to vector<8x32xf32>
    %cst_86 = arith.constant 1.000000e+00 : f32
    %264 = vector.broadcast %cst_86 : f32 to vector<8x32xf32>
    %265 = arith.addf %263, %264 : vector<8x32xf32>
    %cst_87 = arith.constant 5.000000e-01 : f32
    %266 = vector.broadcast %cst_87 : f32 to vector<8x32xf32>
    %267 = arith.mulf %266, %265 : vector<8x32xf32>
    %268 = vector.extract_strided_slice %262 {offsets = [0, 32], sizes = [8, 32], strides = [1, 1]} : vector<8x128xf32> to vector<8x32xf32>
    %cst_88 = arith.constant 1.000000e+00 : f32
    %269 = vector.broadcast %cst_88 : f32 to vector<8x32xf32>
    %270 = arith.addf %268, %269 : vector<8x32xf32>
    %cst_89 = arith.constant 5.000000e-01 : f32
    %271 = vector.broadcast %cst_89 : f32 to vector<8x32xf32>
    %272 = arith.mulf %271, %270 : vector<8x32xf32>
    %273 = vector.extract_strided_slice %262 {offsets = [0, 64], sizes = [8, 32], strides = [1, 1]} : vector<8x128xf32> to vector<8x32xf32>
    %274 = vector.extract_strided_slice %262 {offsets = [0, 96], sizes = [8, 32], strides = [1, 1]} : vector<8x128xf32> to vector<8x32xf32>
    %cst_90 = arith.constant 1.000000e+00 : f32
    %275 = vector.broadcast %cst_90 : f32 to vector<8x32xf32>
    %276 = arith.addf %274, %275 : vector<8x32xf32>
    %cst_91 = arith.constant 5.000000e-01 : f32
    %277 = vector.broadcast %cst_91 : f32 to vector<8x32xf32>
    %278 = arith.mulf %277, %276 : vector<8x32xf32>
    %279 = arith.mulf %272, %255 : vector<8x32xf32>
    %280 = arith.mulf %267, %273 : vector<8x32xf32>
    %281 = arith.addf %279, %280 : vector<8x32xf32>
    %282 = math.tanh %281 : vector<8x32xf32>
    %283 = arith.mulf %278, %282 : vector<8x32xf32>
    %c72 = arith.constant 72 : index
    %c0_92 = arith.constant 0 : index
    %284 = vector.load %arg12[%c72, %c0_92] : memref<80x256xf32, #tpu.memory_space<vmem>>, vector<8x128xf32>
    %285 = arith.truncf %283 : vector<8x32xf32> to vector<8x32xbf16>
    %cst_93 = arith.constant dense<0.000000e+00> : vector<8x128xf32>
    %286 = tpu.matmul %285, %47, %cst_93 {dimension_numbers = #tpu.dot_dimension_numbers<[1], [0], [0], [1], [0, 0, 1, 1], [], []>} : vector<8x32xbf16>, vector<32x128xbf16>, vector<8x128xf32> -> vector<8x128xf32>
    %287 = arith.addf %284, %286 : vector<8x128xf32>
    %288 = math.tanh %287 : vector<8x128xf32>
    %289 = vector.extract_strided_slice %288 {offsets = [0, 0], sizes = [8, 32], strides = [1, 1]} : vector<8x128xf32> to vector<8x32xf32>
    %cst_94 = arith.constant 1.000000e+00 : f32
    %290 = vector.broadcast %cst_94 : f32 to vector<8x32xf32>
    %291 = arith.addf %289, %290 : vector<8x32xf32>
    %cst_95 = arith.constant 5.000000e-01 : f32
    %292 = vector.broadcast %cst_95 : f32 to vector<8x32xf32>
    %293 = arith.mulf %292, %291 : vector<8x32xf32>
    %294 = vector.extract_strided_slice %288 {offsets = [0, 32], sizes = [8, 32], strides = [1, 1]} : vector<8x128xf32> to vector<8x32xf32>
    %cst_96 = arith.constant 1.000000e+00 : f32
    %295 = vector.broadcast %cst_96 : f32 to vector<8x32xf32>
    %296 = arith.addf %294, %295 : vector<8x32xf32>
    %cst_97 = arith.constant 5.000000e-01 : f32
    %297 = vector.broadcast %cst_97 : f32 to vector<8x32xf32>
    %298 = arith.mulf %297, %296 : vector<8x32xf32>
    %299 = vector.extract_strided_slice %288 {offsets = [0, 64], sizes = [8, 32], strides = [1, 1]} : vector<8x128xf32> to vector<8x32xf32>
    %300 = vector.extract_strided_slice %288 {offsets = [0, 96], sizes = [8, 32], strides = [1, 1]} : vector<8x128xf32> to vector<8x32xf32>
    %cst_98 = arith.constant 1.000000e+00 : f32
    %301 = vector.broadcast %cst_98 : f32 to vector<8x32xf32>
    %302 = arith.addf %300, %301 : vector<8x32xf32>
    %cst_99 = arith.constant 5.000000e-01 : f32
    %303 = vector.broadcast %cst_99 : f32 to vector<8x32xf32>
    %304 = arith.mulf %303, %302 : vector<8x32xf32>
    %305 = arith.mulf %298, %281 : vector<8x32xf32>
    %306 = arith.mulf %293, %299 : vector<8x32xf32>
    %307 = arith.addf %305, %306 : vector<8x32xf32>
    %308 = math.tanh %307 : vector<8x32xf32>
    %309 = arith.mulf %304, %308 : vector<8x32xf32>
    %c72_100 = arith.constant 72 : index
    %c128 = arith.constant 128 : index
    %310 = vector.load %arg12[%c72_100, %c128] : memref<80x256xf32, #tpu.memory_space<vmem>>, vector<8x128xf32>
    %311 = math.tanh %310 : vector<8x128xf32>
    %312 = vector.extract_strided_slice %311 {offsets = [0, 0], sizes = [8, 32], strides = [1, 1]} : vector<8x128xf32> to vector<8x32xf32>
    %cst_101 = arith.constant 1.000000e+00 : f32
    %313 = vector.broadcast %cst_101 : f32 to vector<8x32xf32>
    %314 = arith.addf %312, %313 : vector<8x32xf32>
    %cst_102 = arith.constant 5.000000e-01 : f32
    %315 = vector.broadcast %cst_102 : f32 to vector<8x32xf32>
    %316 = arith.mulf %315, %314 : vector<8x32xf32>
    %317 = vector.extract_strided_slice %311 {offsets = [0, 64], sizes = [8, 32], strides = [1, 1]} : vector<8x128xf32> to vector<8x32xf32>
    %318 = vector.extract_strided_slice %311 {offsets = [0, 96], sizes = [8, 32], strides = [1, 1]} : vector<8x128xf32> to vector<8x32xf32>
    %cst_103 = arith.constant 1.000000e+00 : f32
    %319 = vector.broadcast %cst_103 : f32 to vector<8x32xf32>
    %320 = arith.addf %318, %319 : vector<8x32xf32>
    %cst_104 = arith.constant 5.000000e-01 : f32
    %321 = vector.broadcast %cst_104 : f32 to vector<8x32xf32>
    %322 = arith.mulf %321, %320 : vector<8x32xf32>
    %323 = arith.mulf %316, %317 : vector<8x32xf32>
    %324 = math.tanh %323 : vector<8x32xf32>
    %325 = arith.mulf %322, %324 : vector<8x32xf32>
    %326 = tpu.iota {dimensions = array<i32: 0>} : vector<2x8xi32>
    %327 = tpu.iota {dimensions = array<i32: 1>} : vector<2x8xi32>
    %c3_i32 = arith.constant 3 : i32
    %328 = vector.broadcast %c3_i32 : i32 to vector<2x8xi32>
    %329 = arith.muli %326, %328 : vector<2x8xi32>
    %330 = arith.cmpi sge, %327, %329 : vector<2x8xi32>
    %c1_i32 = arith.constant 1 : i32
    %331 = vector.broadcast %c1_i32 : i32 to vector<2x8xi32>
    %332 = arith.addi %326, %331 : vector<2x8xi32>
    %c3_i32_105 = arith.constant 3 : i32
    %333 = vector.broadcast %c3_i32_105 : i32 to vector<2x8xi32>
    %334 = arith.muli %332, %333 : vector<2x8xi32>
    %335 = arith.cmpi slt, %327, %334 : vector<2x8xi32>
    %336 = arith.andi %330, %335 : vector<2x8xi1>
    %cst_106 = arith.constant 0.333333343 : f32
    %cst_107 = arith.constant 0.000000e+00 : f32
    %337 = vector.broadcast %cst_106 : f32 to vector<2x8xf32>
    %338 = vector.broadcast %cst_107 : f32 to vector<2x8xf32>
    %339 = arith.select %336, %337, %338 : vector<2x8xi1>, vector<2x8xf32>
    %c0_108 = arith.constant 0 : index
    %c0_109 = arith.constant 0 : index
    %340 = vector.load %arg7[%c0_108, %c0_109] : memref<64x128xf32, #tpu.memory_space<vmem>>, vector<32x128xf32>
    %cst_110 = arith.constant dense<0.000000e+00> : vector<8x128xf32>
    %341 = tpu.matmul %309, %340, %cst_110 {dimension_numbers = #tpu.dot_dimension_numbers<[1], [0], [0], [1], [0, 0, 1, 1], [], []>} : vector<8x32xf32>, vector<32x128xf32>, vector<8x128xf32> -> vector<8x128xf32>
    %c32_111 = arith.constant 32 : index
    %c0_112 = arith.constant 0 : index
    %342 = vector.load %arg7[%c32_111, %c0_112] : memref<64x128xf32, #tpu.memory_space<vmem>>, vector<32x128xf32>
    %cst_113 = arith.constant dense<0.000000e+00> : vector<8x128xf32>
    %343 = tpu.matmul %325, %342, %cst_113 {dimension_numbers = #tpu.dot_dimension_numbers<[1], [0], [0], [1], [0, 0, 1, 1], [], []>} : vector<8x32xf32>, vector<32x128xf32>, vector<8x128xf32> -> vector<8x128xf32>
    %344 = arith.addf %341, %343 : vector<8x128xf32>
    %cst_114 = arith.constant dense<0.000000e+00> : vector<2x128xf32>
    %345 = tpu.matmul %339, %344, %cst_114 {dimension_numbers = #tpu.dot_dimension_numbers<[1], [0], [0], [1], [0, 0, 1, 1], [], []>} : vector<2x8xf32>, vector<8x128xf32>, vector<2x128xf32> -> vector<2x128xf32>
    %c0_115 = arith.constant 0 : index
    %c0_116 = arith.constant 0 : index
    %346 = vector.load %arg8[%c0_115, %c0_116] : memref<1x128xf32, #tpu.memory_space<vmem>>, vector<1x128xf32>
    %347 = vector.broadcast %346 : vector<1x128xf32> to vector<2x128xf32>
    %348 = arith.addf %345, %347 : vector<2x128xf32>
    %cst_117 = arith.constant 0.000000e+00 : f32
    %349 = vector.broadcast %cst_117 : f32 to vector<2x128xf32>
    %350 = arith.maximumf %348, %349 : vector<2x128xf32>
    %c0_118 = arith.constant 0 : index
    %c0_119 = arith.constant 0 : index
    %351 = vector.load %arg9[%c0_118, %c0_119] : memref<128x2xf32, #tpu.memory_space<vmem>>, vector<128x2xf32>
    %cst_120 = arith.constant dense<0.000000e+00> : vector<2x2xf32>
    %352 = tpu.matmul %350, %351, %cst_120 {dimension_numbers = #tpu.dot_dimension_numbers<[1], [0], [0], [1], [0, 0, 1, 1], [], []>} : vector<2x128xf32>, vector<128x2xf32>, vector<2x2xf32> -> vector<2x2xf32>
    %c0_121 = arith.constant 0 : index
    %c0_122 = arith.constant 0 : index
    %353 = vector.load %arg10[%c0_121, %c0_122] : memref<1x2xf32, #tpu.memory_space<vmem>>, vector<1x2xf32>
    %354 = vector.broadcast %353 : vector<1x2xf32> to vector<2x2xf32>
    %355 = arith.addf %352, %354 : vector<2x2xf32>
    %cst_123 = arith.constant dense<0xFF800000> : vector<2xf32>
    %356 = vector.multi_reduction <maximumf>, %355, %cst_123 [1] : vector<2x2xf32> to vector<2xf32>
    %357 = vector.shape_cast %356 : vector<2xf32> to vector<2x1xf32>
    %358 = vector.broadcast %357 : vector<2x1xf32> to vector<2x2xf32>
    %359 = arith.subf %355, %358 : vector<2x2xf32>
    %360 = math.exp %359 : vector<2x2xf32>
    %cst_124 = arith.constant dense<0.000000e+00> : vector<2xf32>
    %361 = vector.multi_reduction <add>, %360, %cst_124 [1] : vector<2x2xf32> to vector<2xf32>
    %362 = vector.shape_cast %361 : vector<2xf32> to vector<2x1xf32>
    %363 = vector.broadcast %362 : vector<2x1xf32> to vector<2x2xf32>
    %364 = arith.divf %360, %363 : vector<2x2xf32>
    %c0_125 = arith.constant 0 : index
    %c0_126 = arith.constant 0 : index
    %365 = vector.load %arg11[%c0_125, %c0_126] : memref<2x2xf32, #tpu.memory_space<vmem>>, vector<2x2xf32>
    tpu.vector_store %arg11[%c0_125, %c0_126], %364 {strides = array<i32>} : memref<2x2xf32, #tpu.memory_space<vmem>>, vector<2x2xf32>,
    return
  }
}

</mosaic_0001>

<llo_original>
// kernel: pretrain_net_forward.1
$region0: #{pretrain_net_forward.1}
  #allocation0 [shape = 'u32[]', space=smem, size = 0x4, offset = 0x4, fixed_abs, tag = 'smem constant byte address 0x4 - core index']
  #allocation1 [shape = 'u32[72,128]{1,0:T(1,128)}', space=vmem, size = 0x9000, scoped, tag = 'internal scratch']
  #allocation2 [shape = 'f32[80,256]{1,0:T(8,128)}', space=vmem, size = 0x14000, scoped, tag = 'scratch operand']
  %s0 = inlined_call_operand.vmem [shape: f32[80,10], index: 0, kind: input, shape index: {}]
  %s1 = inlined_call_operand.vmem [shape: f32[6], index: 1, kind: input, shape index: {}]
  %s2 = inlined_call_operand.vmem [shape: f32[2], index: 2, kind: input, shape index: {}]
  %s3 = inlined_call_operand.vmem [shape: bf16[8,256], index: 3, kind: input, shape index: {}]
  %s4 = inlined_call_operand.vmem [shape: bf16[8,256], index: 4, kind: input, shape index: {}]
  %s5 = inlined_call_operand.vmem [shape: bf16[32,128], index: 5, kind: input, shape index: {}]
  %s6 = inlined_call_operand.vmem [shape: f32[1,256], index: 6, kind: input, shape index: {}]
  %s7 = inlined_call_operand.vmem [shape: f32[64,128], index: 7, kind: input, shape index: {}]
  %s8 = inlined_call_operand.vmem [shape: f32[1,128], index: 8, kind: input, shape index: {}]
  %s9 = inlined_call_operand.vmem [shape: f32[128,2], index: 9, kind: input, shape index: {}]
  %s10 = inlined_call_operand.vmem [shape: f32[1,2], index: 10, kind: input, shape index: {}]
  %s11 = inlined_call_operand.hbm [shape: f32[2,2], index: 11, kind: output, shape index: {}]
  %s12 = sld [smem:[#allocation0]]
  $region62: #{pretrain_net_forward.1} parent=0
    _
  %s14 = ssub.s32 1, %s12
  %s15 = scalar_select 0, %s14, %s12
  $region1: #{pretrain_net_forward.1} parent=0
    #allocation3 [shape = 'u8[512]{0}', space=smem, size = 0x200, scoped, tag = 'input window, operand 1, single buffered']
    #allocation4 [shape = 's32[1]{0}', space=sflag, size = 0x4, scoped, tag = 'scoped memory for pretrain_net_forward.1']
    #allocation5 [shape = 's32[1]{0}', space=sflag, size = 0x4, scoped, tag = 'scoped memory for pretrain_net_forward.1']
    #allocation6 [shape = 'u8[512]{0}', space=smem, size = 0x200, scoped, tag = 'input window, operand 2, single buffered']
    #allocation7 [shape = 's32[1]{0}', space=sflag, size = 0x4, scoped, tag = 'scoped memory for pretrain_net_forward.1']
    #allocation8 [shape = 'u8[1024]{0}', space=vmem, size = 0x400, scoped, tag = 'output window, operand 0, single buffered']
    %16 = vsyncpa [#allocation5], 0
    %17 = vsyncpa [#allocation7], 0
    %18 = vsyncpa [#allocation4], 0
    // Predicated region
    $region2: #{pretrain_net_forward.1} parent=1 // pred_check
      _
    $region3: #{pretrain_net_forward.1} parent=1 // pred_check_branch
      %20 = sbr.rel (0) target = $region5
    $region4: #{pretrain_net_forward.1} parent=1 // pred_region
      _
    $region5: #{pretrain_net_forward.1} parent=1 // pred_fallthru
      _
    // Predicated region
    $region6: #{pretrain_net_forward.1} parent=1 // pred_check
      _
    $region7: #{pretrain_net_forward.1} parent=1 // pred_check_branch
      %22 = sbr.rel (0) target = $region9
    $region8: #{pretrain_net_forward.1} parent=1 // pred_region
      %24 = vsyncadd [#allocation5], 0
      %s26 = sshll.u32 %s1, 4
      %s27 = int_to_ptr.vmem [resolvable:$true] %s26
      %29 = dma.vmem_to_smem %s27, 16, [#allocation3], [#allocation5]
    $region9: #{pretrain_net_forward.1} parent=1 // pred_fallthru
      _
    // Predicated region
    $region10: #{pretrain_net_forward.1} parent=1 // pred_check
      _
    $region11: #{pretrain_net_forward.1} parent=1 // pred_check_branch
      %31 = sbr.rel (0) target = $region13
    $region12: #{pretrain_net_forward.1} parent=1 // pred_region
      %33 = vsyncadd [#allocation7], 0
      %s35 = sshll.u32 %s2, 4
      %s36 = int_to_ptr.vmem [resolvable:$true] %s35
      %38 = dma.vmem_to_smem %s36, 16, [#allocation6], [#allocation7]
    $region13: #{pretrain_net_forward.1} parent=1 // pred_fallthru
      _
    // Predicated region
    $region14: #{pretrain_net_forward.1} parent=1 // pred_check
      _
    $region15: #{pretrain_net_forward.1} parent=1 // pred_check_branch
      %40 = sbr.rel (0) target = $region17
    $region16: #{pretrain_net_forward.1} parent=1 // pred_region
      _
    $region17: #{pretrain_net_forward.1} parent=1 // pred_fallthru
      _
    // Predicated region
    $region18: #{pretrain_net_forward.1} parent=1 // pred_check
      _
    $region19: #{pretrain_net_forward.1} parent=1 // pred_check_branch
      %42 = sbr.rel (0) target = $region21
    $region20: #{pretrain_net_forward.1} parent=1 // pred_region
      _
    $region21: #{pretrain_net_forward.1} parent=1 // pred_fallthru
      _
    // Predicated region
    $region22: #{pretrain_net_forward.1} parent=1 // pred_check
      _
    $region23: #{pretrain_net_forward.1} parent=1 // pred_check_branch
      %44 = sbr.rel (0) target = $region25
    $region24: #{pretrain_net_forward.1} parent=1 // pred_region
      _
    $region25: #{pretrain_net_forward.1} parent=1 // pred_fallthru
      _
    // Predicated region
    $region26: #{pretrain_net_forward.1} parent=1 // pred_check
      _
    $region27: #{pretrain_net_forward.1} parent=1 // pred_check_branch
      %46 = sbr.rel (0) target = $region29
    $region28: #{pretrain_net_forward.1} parent=1 // pred_region
      _
    $region29: #{pretrain_net_forward.1} parent=1 // pred_fallthru
      _
    // Predicated region
    $region30: #{pretrain_net_forward.1} parent=1 // pred_check
      _
    $region31: #{pretrain_net_forward.1} parent=1 // pred_check_branch
      %48 = sbr.rel (0) target = $region33
    $region32: #{pretrain_net_forward.1} parent=1 // pred_region
      _
    $region33: #{pretrain_net_forward.1} parent=1 // pred_fallthru
      _
    // Predicated region
    $region34: #{pretrain_net_forward.1} parent=1 // pred_check
      _
    $region35: #{pretrain_net_forward.1} parent=1 // pred_check_branch
      %50 = sbr.rel (0) target = $region37
    $region36: #{pretrain_net_forward.1} parent=1 // pred_region
      _
    $region37: #{pretrain_net_forward.1} parent=1 // pred_fallthru
      _
    // Predicated region
    $region38: #{pretrain_net_forward.1} parent=1 // pred_check
      _
    $region39: #{pretrain_net_forward.1} parent=1 // pred_check_branch
      %52 = sbr.rel (0) target = $region41
    $region40: #{pretrain_net_forward.1} parent=1 // pred_region
      _
    $region41: #{pretrain_net_forward.1} parent=1 // pred_fallthru
      _
    // Predicated region
    $region42: #{pretrain_net_forward.1} parent=1 // pred_check
      _
    $region43: #{pretrain_net_forward.1} parent=1 // pred_check_branch
      %54 = sbr.rel (0) target = $region45
    $region44: #{pretrain_net_forward.1} parent=1 // pred_region
      _
    $region45: #{pretrain_net_forward.1} parent=1 // pred_fallthru
      _
    // Predicated region
    $region46: #{pretrain_net_forward.1} parent=1 // pred_check
      _
    $region47: #{pretrain_net_forward.1} parent=1 // pred_check_branch
      %56 = sbr.rel (0) target = $region49
    $region48: #{pretrain_net_forward.1} parent=1 // pred_region
      %58 = dma.done [#allocation5], 16
    $region49: #{pretrain_net_forward.1} parent=1 // pred_fallthru
      _
    // Predicated region
    $region50: #{pretrain_net_forward.1} parent=1 // pred_check
      _
    $region51: #{pretrain_net_forward.1} parent=1 // pred_check_branch
      %60 = sbr.rel (0) target = $region53
    $region52: #{pretrain_net_forward.1} parent=1 // pred_region
      %62 = dma.done [#allocation7], 16
    $region53: #{pretrain_net_forward.1} parent=1 // pred_fallthru
      _
    %63 = sfence
    %v65 = vld [vmem:[%s0] sm:$0xff]
    %v66 = vld [vmem:[%s0 + $0x8] sm:$0xff]
    %v67 = vld [vmem:[%s0 + $0x10] sm:$0xff]
    %v68 = vld [vmem:[%s0 + $0x18] sm:$0xff]
    %v69 = vld [vmem:[%s0 + $0x20] sm:$0xff]
    %v70 = vld [vmem:[%s0 + $0x28] sm:$0xff]
    %v71 = vld [vmem:[%s0 + $0x30] sm:$0xff]
    %v72 = vld [vmem:[%s0 + $0x38] sm:$0xff]
    %v73 = vld [vmem:[%s0 + $0x40] sm:$0xff]
    %v74 = vld [vmem:[%s0 + $0x48] sm:$0xff]
    %s75 = sld [smem:[#allocation6]]
    %s76 = sld [smem:[#allocation3]]
    %v77 = vstv %s76
    %v78 = vmul.f32 %v77, %v65
    %v79 = vmul.f32 %v77, %v66
    %v80 = vmul.f32 %v77, %v67
    %v81 = vmul.f32 %v77, %v68
    %v82 = vmul.f32 %v77, %v69
    %v83 = vmul.f32 %v77, %v70
    %v84 = vmul.f32 %v77, %v71
    %v85 = vmul.f32 %v77, %v72
    %v86 = vmul.f32 %v77, %v73
    %v87 = vmul.f32 %v77, %v74
    %v88 = vstv %s75
    %v89 = vadd.f32 %v88, %v78
    %v90 = vadd.f32 %v88, %v79
    %v91 = vadd.f32 %v88, %v80
    %v92 = vadd.f32 %v88, %v81
    %v93 = vadd.f32 %v88, %v82
    %v94 = vadd.f32 %v88, %v83
    %v95 = vadd.f32 %v88, %v84
    %v96 = vadd.f32 %v88, %v85
    %v97 = vadd.f32 %v88, %v86
    %v98 = vadd.f32 %v88, %v87
    %s99 = sld [smem:[#allocation3 + $0x1]]
    %v100 = vstv %s99
    %v101 = vmul.f32 %v100, %v65
    %v102 = vmul.f32 %v100, %v66
    %v103 = vmul.f32 %v100, %v67
    %v104 = vmul.f32 %v100, %v68
    %v105 = vmul.f32 %v100, %v69
    %v106 = vmul.f32 %v100, %v70
    %v107 = vmul.f32 %v100, %v71
    %v108 = vmul.f32 %v100, %v72
    %v109 = vmul.f32 %v100, %v73
    %v110 = vmul.f32 %v100, %v74
    %121 = vrot.lane.b32.xlu0 %v101, 127
    %v122 = vpop.permute.xlu0 %121
    %123 = vrot.lane.b32.xlu0 %v102, 127
    %v124 = vpop.permute.xlu0 %123
    %125 = vrot.lane.b32.xlu0 %v103, 127
    %v126 = vpop.permute.xlu0 %125
    %127 = vrot.lane.b32.xlu0 %v104, 127
    %v128 = vpop.permute.xlu0 %127
    %129 = vrot.lane.b32.xlu0 %v105, 127
    %v130 = vpop.permute.xlu0 %129
    %131 = vrot.lane.b32.xlu0 %v106, 127
    %v132 = vpop.permute.xlu0 %131
    %133 = vrot.lane.b32.xlu0 %v107, 127
    %v134 = vpop.permute.xlu0 %133
    %135 = vrot.lane.b32.xlu0 %v108, 127
    %v136 = vpop.permute.xlu0 %135
    %137 = vrot.lane.b32.xlu0 %v109, 127
    %v138 = vpop.permute.xlu0 %137
    %139 = vrot.lane.b32.xlu0 %v110, 127
    %v140 = vpop.permute.xlu0 %139
    %v151 = vadd.f32 %v89, %v122
    %v152 = vadd.f32 %v90, %v124
    %v153 = vadd.f32 %v91, %v126
    %v154 = vadd.f32 %v92, %v128
    %v155 = vadd.f32 %v93, %v130
    %v156 = vadd.f32 %v94, %v132
    %v157 = vadd.f32 %v95, %v134
    %v158 = vadd.f32 %v96, %v136
    %v159 = vadd.f32 %v97, %v138
    %v160 = vadd.f32 %v98, %v140
    %s161 = sld [smem:[#allocation3 + $0x2]]
    %v162 = vstv %s161
    %v163 = vmul.f32 %v162, %v65
    %v164 = vmul.f32 %v162, %v66
    %v165 = vmul.f32 %v162, %v67
    %v166 = vmul.f32 %v162, %v68
    %v167 = vmul.f32 %v162, %v69
    %v168 = vmul.f32 %v162, %v70
    %v169 = vmul.f32 %v162, %v71
    %v170 = vmul.f32 %v162, %v72
    %v171 = vmul.f32 %v162, %v73
    %v172 = vmul.f32 %v162, %v74
    %183 = vrot.lane.b32.xlu0 %v163, 126
    %v184 = vpop.permute.xlu0 %183
    %185 = vrot.lane.b32.xlu0 %v164, 126
    %v186 = vpop.permute.xlu0 %185
    %187 = vrot.lane.b32.xlu0 %v165, 126
    %v188 = vpop.permute.xlu0 %187
    %189 = vrot.lane.b32.xlu0 %v166, 126
    %v190 = vpop.permute.xlu0 %189
    %191 = vrot.lane.b32.xlu0 %v167, 126
    %v192 = vpop.permute.xlu0 %191
    %193 = vrot.lane.b32.xlu0 %v168, 126
    %v194 = vpop.permute.xlu0 %193
    %195 = vrot.lane.b32.xlu0 %v169, 126
    %v196 = vpop.permute.xlu0 %195
    %197 = vrot.lane.b32.xlu0 %v170, 126
    %v198 = vpop.permute.xlu0 %197
    %199 = vrot.lane.b32.xlu0 %v171, 126
    %v200 = vpop.permute.xlu0 %199
    %201 = vrot.lane.b32.xlu0 %v172, 126
    %v202 = vpop.permute.xlu0 %201
    %v213 = vadd.f32 %v151, %v184
    %v214 = vadd.f32 %v152, %v186
    %v215 = vadd.f32 %v153, %v188
    %v216 = vadd.f32 %v154, %v190
    %v217 = vadd.f32 %v155, %v192
    %v218 = vadd.f32 %v156, %v194
    %v219 = vadd.f32 %v157, %v196
    %v220 = vadd.f32 %v158, %v198
    %v221 = vadd.f32 %v159, %v200
    %v222 = vadd.f32 %v160, %v202
    %v223 = vmax.f32 %v213, 0.0
    %v224 = vmax.f32 %v214, 0.0
    %v225 = vmax.f32 %v215, 0.0
    %v226 = vmax.f32 %v216, 0.0
    %v227 = vmax.f32 %v217, 0.0
    %v228 = vmax.f32 %v218, 0.0
    %v229 = vmax.f32 %v219, 0.0
    %v230 = vmax.f32 %v220, 0.0
    %v231 = vmax.f32 %v221, 0.0
    %v232 = vmax.f32 %v222, 0.0
    %s233 = sld [smem:[#allocation6 + $0x1]]
    %s234 = sld [smem:[#allocation3 + $0x3]]
    %v235 = vstv %s234
    %v236 = vmul.f32 %v235, %v65
    %v237 = vmul.f32 %v235, %v66
    %v238 = vmul.f32 %v235, %v67
    %v239 = vmul.f32 %v235, %v68
    %v240 = vmul.f32 %v235, %v69
    %v241 = vmul.f32 %v235, %v70
    %v242 = vmul.f32 %v235, %v71
    %v243 = vmul.f32 %v235, %v72
    %v244 = vmul.f32 %v235, %v73
    %v245 = vmul.f32 %v235, %v74
    %v246 = vstv %s233
    %v247 = vadd.f32 %v246, %v236
    %v248 = vadd.f32 %v246, %v237
    %v249 = vadd.f32 %v246, %v238
    %v250 = vadd.f32 %v246, %v239
    %v251 = vadd.f32 %v246, %v240
    %v252 = vadd.f32 %v246, %v241
    %v253 = vadd.f32 %v246, %v242
    %v254 = vadd.f32 %v246, %v243
    %v255 = vadd.f32 %v246, %v244
    %v256 = vadd.f32 %v246, %v245
    %s257 = sld [smem:[#allocation3 + $0x4]]
    %v258 = vstv %s257
    %v259 = vmul.f32 %v258, %v65
    %v260 = vmul.f32 %v258, %v66
    %v261 = vmul.f32 %v258, %v67
    %v262 = vmul.f32 %v258, %v68
    %v263 = vmul.f32 %v258, %v69
    %v264 = vmul.f32 %v258, %v70
    %v265 = vmul.f32 %v258, %v71
    %v266 = vmul.f32 %v258, %v72
    %v267 = vmul.f32 %v258, %v73
    %v268 = vmul.f32 %v258, %v74
    %279 = vrot.lane.b32.xlu0 %v259, 127
    %v280 = vpop.permute.xlu0 %279
    %281 = vrot.lane.b32.xlu0 %v260, 127
    %v282 = vpop.permute.xlu0 %281
    %283 = vrot.lane.b32.xlu0 %v261, 127
    %v284 = vpop.permute.xlu0 %283
    %285 = vrot.lane.b32.xlu0 %v262, 127
    %v286 = vpop.permute.xlu0 %285
    %287 = vrot.lane.b32.xlu0 %v263, 127
    %v288 = vpop.permute.xlu0 %287
    %289 = vrot.lane.b32.xlu0 %v264, 127
    %v290 = vpop.permute.xlu0 %289
    %291 = vrot.lane.b32.xlu0 %v265, 127
    %v292 = vpop.permute.xlu0 %291
    %293 = vrot.lane.b32.xlu0 %v266, 127
    %v294 = vpop.permute.xlu0 %293
    %295 = vrot.lane.b32.xlu0 %v267, 127
    %v296 = vpop.permute.xlu0 %295
    %297 = vrot.lane.b32.xlu0 %v268, 127
    %v298 = vpop.permute.xlu0 %297
    %v309 = vadd.f32 %v247, %v280
    %v310 = vadd.f32 %v248, %v282
    %v311 = vadd.f32 %v249, %v284
    %v312 = vadd.f32 %v250, %v286
    %v313 = vadd.f32 %v251, %v288
    %v314 = vadd.f32 %v252, %v290
    %v315 = vadd.f32 %v253, %v292
    %v316 = vadd.f32 %v254, %v294
    %v317 = vadd.f32 %v255, %v296
    %v318 = vadd.f32 %v256, %v298
    %s319 = sld [smem:[#allocation3 + $0x5]]
    %v320 = vstv %s319
    %v321 = vmul.f32 %v320, %v65
    %v322 = vmul.f32 %v320, %v66
    %v323 = vmul.f32 %v320, %v67
    %v324 = vmul.f32 %v320, %v68
    %v325 = vmul.f32 %v320, %v69
    %v326 = vmul.f32 %v320, %v70
    %v327 = vmul.f32 %v320, %v71
    %v328 = vmul.f32 %v320, %v72
    %v329 = vmul.f32 %v320, %v73
    %v330 = vmul.f32 %v320, %v74
    %341 = vrot.lane.b32.xlu0 %v321, 126
    %v342 = vpop.permute.xlu0 %341
    %343 = vrot.lane.b32.xlu0 %v322, 126
    %v344 = vpop.permute.xlu0 %343
    %345 = vrot.lane.b32.xlu0 %v323, 126
    %v346 = vpop.permute.xlu0 %345
    %347 = vrot.lane.b32.xlu0 %v324, 126
    %v348 = vpop.permute.xlu0 %347
    %349 = vrot.lane.b32.xlu0 %v325, 126
    %v350 = vpop.permute.xlu0 %349
    %351 = vrot.lane.b32.xlu0 %v326, 126
    %v352 = vpop.permute.xlu0 %351
    %353 = vrot.lane.b32.xlu0 %v327, 126
    %v354 = vpop.permute.xlu0 %353
    %355 = vrot.lane.b32.xlu0 %v328, 126
    %v356 = vpop.permute.xlu0 %355
    %357 = vrot.lane.b32.xlu0 %v329, 126
    %v358 = vpop.permute.xlu0 %357
    %359 = vrot.lane.b32.xlu0 %v330, 126
    %v360 = vpop.permute.xlu0 %359
    %v371 = vadd.f32 %v309, %v342
    %v372 = vadd.f32 %v310, %v344
    %v373 = vadd.f32 %v311, %v346
    %v374 = vadd.f32 %v312, %v348
    %v375 = vadd.f32 %v313, %v350
    %v376 = vadd.f32 %v314, %v352
    %v377 = vadd.f32 %v315, %v354
    %v378 = vadd.f32 %v316, %v356
    %v379 = vadd.f32 %v317, %v358
    %v380 = vadd.f32 %v318, %v360
    %v381 = vmax.f32 %v371, 0.0
    %v382 = vmax.f32 %v372, 0.0
    %v383 = vmax.f32 %v373, 0.0
    %v384 = vmax.f32 %v374, 0.0
    %v385 = vmax.f32 %v375, 0.0
    %v386 = vmax.f32 %v376, 0.0
    %v387 = vmax.f32 %v377, 0.0
    %v388 = vmax.f32 %v378, 0.0
    %v389 = vmax.f32 %v379, 0.0
    %v390 = vmax.f32 %v380, 0.0
    %v391 = vpack.c.bf16 %v224, %v223
    %v392 = vpack.c.bf16 %v226, %v225
    %v393 = vpack.c.bf16 %v228, %v227
    %v394 = vpack.c.bf16 %v230, %v229
    %v395 = vpack.c.bf16 %v232, %v231
    %v396 = vld [vmem:[%s3] sm:$0xff]
    %v397 = vpack.c.bf16 %v382, %v381
    %v398 = vpack.c.bf16 %v384, %v383
    %v399 = vpack.c.bf16 %v386, %v385
    %v400 = vpack.c.bf16 %v388, %v387
    %v401 = vpack.c.bf16 %v390, %v389
    %v402 = vld [vmem:[%s4] sm:$0xff]
    %v404 = vunpack.c.l.b16 %v402
    %v405 = vunpack.c.h.b16 %v402
    %v406 = vpack.c.b16 %v404, %v404
    %v407 = vpack.c.b16 %v405, %v405
    %vm408 = vcmask 64512
    %v410 = vsel %vm408, %v397, 0
    %v413 = vsel %vm408, %v398, 0
    %v416 = vsel %vm408, %v399, 0
    %v419 = vsel %vm408, %v400, 0
    %v422 = vsel %vm408, %v401, 0
    %vm424 = vcmask 1043456
    %v426 = vsel %vm424, %v406, 0
    %v429 = vsel %vm424, %v407, 0
    %431 = vmatpush.bf16.msra.mxu0 0
    %432 = vmatpush.bf16.msra.mxu0 0
    %433 = vmatpush.bf16.msra.mxu0 0
    %434 = vmatpush.bf16.msra.mxu0 0
    %435 = vmatpush.bf16.msra.mxu0 0
    %436 = vmatpush.bf16.msra.mxu0 0
    %437 = vmatpush.bf16.msra.mxu0 0
    %438 = vmatpush.bf16.msra.mxu0 %v426
    %439 = vmatmul.bf16.gmra.mxu0 %v410
    %v440 = vpop.f32.mrf.mxu0
    %v441 = vadd.f32 0.0, %v440
    %v442 = vpop.f32.mrf.mxu0
    %v443 = vadd.f32 0.0, %v442
    %444 = vmatmul.bf16.gmra.mxu0 %v413
    %v445 = vpop.f32.mrf.mxu0
    %v446 = vadd.f32 0.0, %v445
    %v447 = vpop.f32.mrf.mxu0
    %v448 = vadd.f32 0.0, %v447
    %449 = vmatmul.bf16.gmra.mxu0 %v416
    %v450 = vpop.f32.mrf.mxu0
    %v451 = vadd.f32 0.0, %v450
    %v452 = vpop.f32.mrf.mxu0
    %v453 = vadd.f32 0.0, %v452
    %454 = vmatmul.bf16.gmra.mxu0 %v419
    %v455 = vpop.f32.mrf.mxu0
    %v456 = vadd.f32 0.0, %v455
    %v457 = vpop.f32.mrf.mxu0
    %v458 = vadd.f32 0.0, %v457
    %459 = vmatmul.bf16.gmra.mxu0 %v422
    %v460 = vpop.f32.mrf.mxu0
    %v461 = vadd.f32 0.0, %v460
    %v462 = vpop.f32.mrf.mxu0
    %v463 = vadd.f32 0.0, %v462
    %464 = vdwg.mxu0
    %465 = vmatpush.bf16.msra.mxu0 0
    %466 = vmatpush.bf16.msra.mxu0 0
    %467 = vmatpush.bf16.msra.mxu0 0
    %468 = vmatpush.bf16.msra.mxu0 0
    %469 = vmatpush.bf16.msra.mxu0 0
    %470 = vmatpush.bf16.msra.mxu0 0
    %471 = vmatpush.bf16.msra.mxu0 0
    %472 = vmatpush.bf16.msra.mxu0 %v429
    %473 = vmatmul.bf16.gmra.mxu0 %v410
    %v474 = vpop.f32.mrf.mxu0
    %v475 = vadd.f32 0.0, %v474
    %v476 = vpop.f32.mrf.mxu0
    %v477 = vadd.f32 0.0, %v476
    %478 = vmatmul.bf16.gmra.mxu0 %v413
    %v479 = vpop.f32.mrf.mxu0
    %v480 = vadd.f32 0.0, %v479
    %v481 = vpop.f32.mrf.mxu0
    %v482 = vadd.f32 0.0, %v481
    %483 = vmatmul.bf16.gmra.mxu0 %v416
    %v484 = vpop.f32.mrf.mxu0
    %v485 = vadd.f32 0.0, %v484
    %v486 = vpop.f32.mrf.mxu0
    %v487 = vadd.f32 0.0, %v486
    %488 = vmatmul.bf16.gmra.mxu0 %v419
    %v489 = vpop.f32.mrf.mxu0
    %v490 = vadd.f32 0.0, %v489
    %v491 = vpop.f32.mrf.mxu0
    %v492 = vadd.f32 0.0, %v491
    %493 = vmatmul.bf16.gmra.mxu0 %v422
    %v494 = vpop.f32.mrf.mxu0
    %v495 = vadd.f32 0.0, %v494
    %v496 = vpop.f32.mrf.mxu0
    %v497 = vadd.f32 0.0, %v496
    %498 = vdwg.mxu0
    %v500 = vunpack.c.l.b16 %v396
    %v501 = vunpack.c.h.b16 %v396
    %v502 = vpack.c.b16 %v500, %v500
    %v503 = vpack.c.b16 %v501, %v501
    %v505 = vsel %vm408, %v391, 0
    %v508 = vsel %vm408, %v392, 0
    %v511 = vsel %vm408, %v393, 0
    %v514 = vsel %vm408, %v394, 0
    %v517 = vsel %vm408, %v395, 0
    %v520 = vsel %vm424, %v502, 0
    %v523 = vsel %vm424, %v503, 0
    %525 = vmatpush.bf16.msra.mxu0 0
    %526 = vmatpush.bf16.msra.mxu0 0
    %527 = vmatpush.bf16.msra.mxu0 0
    %528 = vmatpush.bf16.msra.mxu0 0
    %529 = vmatpush.bf16.msra.mxu0 0
    %530 = vmatpush.bf16.msra.mxu0 0
    %531 = vmatpush.bf16.msra.mxu0 0
    %532 = vmatpush.bf16.msra.mxu0 %v520
    %533 = vmatmul.bf16.gmra.mxu0 %v505
    %v534 = vpop.f32.mrf.mxu0
    %v535 = vadd.f32 %v441, %v534
    %v536 = vpop.f32.mrf.mxu0
    %v537 = vadd.f32 %v443, %v536
    %538 = vmatmul.bf16.gmra.mxu0 %v508
    %v539 = vpop.f32.mrf.mxu0
    %v540 = vadd.f32 %v446, %v539
    %v541 = vpop.f32.mrf.mxu0
    %v542 = vadd.f32 %v448, %v541
    %543 = vmatmul.bf16.gmra.mxu0 %v511
    %v544 = vpop.f32.mrf.mxu0
    %v545 = vadd.f32 %v451, %v544
    %v546 = vpop.f32.mrf.mxu0
    %v547 = vadd.f32 %v453, %v546
    %548 = vmatmul.bf16.gmra.mxu0 %v514
    %v549 = vpop.f32.mrf.mxu0
    %v550 = vadd.f32 %v456, %v549
    %v551 = vpop.f32.mrf.mxu0
    %v552 = vadd.f32 %v458, %v551
    %553 = vmatmul.bf16.gmra.mxu0 %v517
    %v554 = vpop.f32.mrf.mxu0
    %v555 = vadd.f32 %v461, %v554
    %v556 = vpop.f32.mrf.mxu0
    %v557 = vadd.f32 %v463, %v556
    %558 = vdwg.mxu0
    %559 = vmatpush.bf16.msra.mxu0 0
    %560 = vmatpush.bf16.msra.mxu0 0
    %561 = vmatpush.bf16.msra.mxu0 0
    %562 = vmatpush.bf16.msra.mxu0 0
    %563 = vmatpush.bf16.msra.mxu0 0
    %564 = vmatpush.bf16.msra.mxu0 0
    %565 = vmatpush.bf16.msra.mxu0 0
    %566 = vmatpush.bf16.msra.mxu0 %v523
    %567 = vmatmul.bf16.gmra.mxu0 %v505
    %v568 = vpop.f32.mrf.mxu0
    %v569 = vadd.f32 %v475, %v568
    %v570 = vpop.f32.mrf.mxu0
    %v571 = vadd.f32 %v477, %v570
    %572 = vmatmul.bf16.gmra.mxu0 %v508
    %v573 = vpop.f32.mrf.mxu0
    %v574 = vadd.f32 %v480, %v573
    %v575 = vpop.f32.mrf.mxu0
    %v576 = vadd.f32 %v482, %v575
    %577 = vmatmul.bf16.gmra.mxu0 %v511
    %v578 = vpop.f32.mrf.mxu0
    %v579 = vadd.f32 %v485, %v578
    %v580 = vpop.f32.mrf.mxu0
    %v581 = vadd.f32 %v487, %v580
    %582 = vmatmul.bf16.gmra.mxu0 %v514
    %v583 = vpop.f32.mrf.mxu0
    %v584 = vadd.f32 %v490, %v583
    %v585 = vpop.f32.mrf.mxu0
    %v586 = vadd.f32 %v492, %v585
    %587 = vmatmul.bf16.gmra.mxu0 %v517
    %v588 = vpop.f32.mrf.mxu0
    %v589 = vadd.f32 %v495, %v588
    %v590 = vpop.f32.mrf.mxu0
    %v591 = vadd.f32 %v497, %v590
    %592 = vdwg.mxu0
    %v593 = vld [vmem:[%s6] sm:$0x3]
    %v595 = vperm.slane %v593, 0
    %v596 = vperm.slane %v593, 1
    %v599 = vadd.f32 %v535, %v595
    %v600 = vadd.f32 %v569, %v596
    %v601 = vadd.f32 %v537, %v595
    %v602 = vadd.f32 %v571, %v596
    %v603 = vadd.f32 %v540, %v595
    %v604 = vadd.f32 %v574, %v596
    %v605 = vadd.f32 %v542, %v595
    %v606 = vadd.f32 %v576, %v596
    %v607 = vadd.f32 %v545, %v595
    %v608 = vadd.f32 %v579, %v596
    %v609 = vadd.f32 %v547, %v595
    %v610 = vadd.f32 %v581, %v596
    %v611 = vadd.f32 %v550, %v595
    %v612 = vadd.f32 %v584, %v596
    %v613 = vadd.f32 %v552, %v595
    %v614 = vadd.f32 %v586, %v596
    %v615 = vadd.f32 %v555, %v595
    %v616 = vadd.f32 %v589, %v596
    %v617 = vadd.f32 %v557, %v595
    %v618 = vadd.f32 %v591, %v596
    %619 = vst [vmem:[#allocation2] sm:$0xff] %v599
    %620 = vst [vmem:[#allocation2 + $0x8] sm:$0xff] %v600
    %621 = vst [vmem:[#allocation2 + $0x10] sm:$0xff] %v601
    %622 = vst [vmem:[#allocation2 + $0x18] sm:$0xff] %v602
    %623 = vst [vmem:[#allocation2 + $0x20] sm:$0xff] %v603
    %624 = vst [vmem:[#allocation2 + $0x28] sm:$0xff] %v604
    %625 = vst [vmem:[#allocation2 + $0x30] sm:$0xff] %v605
    %626 = vst [vmem:[#allocation2 + $0x38] sm:$0xff] %v606
    %627 = vst [vmem:[#allocation2 + $0x40] sm:$0xff] %v607
    %628 = vst [vmem:[#allocation2 + $0x48] sm:$0xff] %v608
    %629 = vst [vmem:[#allocation2 + $0x50] sm:$0xff] %v609
    %630 = vst [vmem:[#allocation2 + $0x58] sm:$0xff] %v610
    %631 = vst [vmem:[#allocation2 + $0x60] sm:$0xff] %v611
    %632 = vst [vmem:[#allocation2 + $0x68] sm:$0xff] %v612
    %633 = vst [vmem:[#allocation2 + $0x70] sm:$0xff] %v613
    %634 = vst [vmem:[#allocation2 + $0x78] sm:$0xff] %v614
    %635 = vst [vmem:[#allocation2 + $0x80] sm:$0xff] %v615
    %636 = vst [vmem:[#allocation2 + $0x88] sm:$0xff] %v616
    %637 = vst [vmem:[#allocation2 + $0x90] sm:$0xff] %v617
    %638 = vst [vmem:[#allocation2 + $0x98] sm:$0xff] %v618
    %v639 = vld [vmem:[%s5] sm:$0xf]
    %v640 = vld [vmem:[%s5 + $0x4] sm:$0xf]
    %v641 = vld [vmem:[%s5 + $0x8] sm:$0xf]
    %v642 = vld [vmem:[%s5 + $0xc] sm:$0xf]
    %v643 = vld [vmem:[#allocation2] sm:$0xff]
    %v648 = vunpack.c.l.b16 %v639
    %v649 = vunpack.c.l.b16 %v640
    %v650 = vunpack.c.l.b16 %v641
    %v651 = vunpack.c.l.b16 %v642
    %v652 = vpack.c.b16 %v649, %v648
    %v653 = vpack.c.b16 %v651, %v650
    %vm656 = vcmask 261120
    %v658 = vsel %vm656, 0, 0
    %660 = vmatpush.bf16.msra.mxu0 0
    %661 = vmatpush.bf16.msra.mxu0 0
    %662 = vmatpush.bf16.msra.mxu0 0
    %663 = vmatpush.bf16.msra.mxu0 0
    %664 = vmatpush.bf16.msra.mxu0 0
    %665 = vmatpush.bf16.msra.mxu0 0
    %666 = vmatpush.bf16.msra.mxu0 %v653
    %667 = vmatpush.bf16.msra.mxu0 %v652
    %668 = vmatmul.bf16.gmra.mxu0 %v658
    %v669 = vpop.f32.mrf.mxu0
    %v670 = vadd.f32 0.0, %v669
    %v671 = vpop.f32.mrf.mxu0
    %672 = vdwg.mxu0
    %v673 = vadd.f32 %v643, %v670
    %v674 = vtanh.pop %v673
    %v675 = vadd.f32 %v674, 1.0
    %v676 = vmul.f32 %v675, 0.5
    %v677 = vmul.f32 %v676, 0.0
    %679 = vrot.lane.b32.xlu0 %v674, 64
    %v680 = vpop.permute.xlu0 %679
    %v682 = vmul.f32 %v676, %v680
    %684 = vrot.lane.b32.xlu0 %v682, 32
    %v685 = vpop.permute.xlu0 %684
    %v687 = vadd.f32 %v677, %v685
    %v688 = vtanh.pop %v687
    %690 = vrot.lane.b32.xlu0 %v688, 64
    %v691 = vpop.permute.xlu0 %690
    %v693 = vmul.f32 %v676, %v691
    %v694 = vld [vmem:[#allocation2 + $0x10] sm:$0xff]
    %v695 = vpack.c.bf16 %v693, %v693
    %697 = vrot.lane.b32.xlu0 %v695, 32
    %v698 = vpop.permute.xlu0 %697
    %v700 = vsel %vm656, %v698, 0
    %702 = vmatpush.bf16.msra.mxu0 0
    %703 = vmatpush.bf16.msra.mxu0 0
    %704 = vmatpush.bf16.msra.mxu0 0
    %705 = vmatpush.bf16.msra.mxu0 0
    %706 = vmatpush.bf16.msra.mxu0 0
    %707 = vmatpush.bf16.msra.mxu0 0
    %708 = vmatpush.bf16.msra.mxu0 %v653
    %709 = vmatpush.bf16.msra.mxu0 %v652
    %710 = vmatmul.bf16.gmra.mxu0 %v700
    %v711 = vpop.f32.mrf.mxu0
    %v712 = vadd.f32 0.0, %v711
    %v713 = vpop.f32.mrf.mxu0
    %714 = vdwg.mxu0
    %v715 = vadd.f32 %v694, %v712
    %v716 = vtanh.pop %v715
    %v717 = vadd.f32 %v716, 1.0
    %v718 = vmul.f32 %v717, 0.5
    %v719 = vmul.f32 %v718, %v687
    %721 = vrot.lane.b32.xlu0 %v716, 64
    %v722 = vpop.permute.xlu0 %721
    %v724 = vmul.f32 %v718, %v722
    %726 = vrot.lane.b32.xlu0 %v724, 32
    %v727 = vpop.permute.xlu0 %726
    %v729 = vadd.f32 %v719, %v727
    %v730 = vtanh.pop %v729
    %732 = vrot.lane.b32.xlu0 %v730, 64
    %v733 = vpop.permute.xlu0 %732
    %v735 = vmul.f32 %v718, %v733
    %v736 = vld [vmem:[#allocation2 + $0x20] sm:$0xff]
    %v737 = vpack.c.bf16 %v735, %v735
    %739 = vrot.lane.b32.xlu0 %v737, 32
    %v740 = vpop.permute.xlu0 %739
    %v742 = vsel %vm656, %v740, 0
    %744 = vmatpush.bf16.msra.mxu0 0
    %745 = vmatpush.bf16.msra.mxu0 0
    %746 = vmatpush.bf16.msra.mxu0 0
    %747 = vmatpush.bf16.msra.mxu0 0
    %748 = vmatpush.bf16.msra.mxu0 0
    %749 = vmatpush.bf16.msra.mxu0 0
    %750 = vmatpush.bf16.msra.mxu0 %v653
    %751 = vmatpush.bf16.msra.mxu0 %v652
    %752 = vmatmul.bf16.gmra.mxu0 %v742
    %v753 = vpop.f32.mrf.mxu0
    %v754 = vadd.f32 0.0, %v753
    %v755 = vpop.f32.mrf.mxu0
    %756 = vdwg.mxu0
    %v757 = vadd.f32 %v736, %v754
    %v758 = vtanh.pop %v757
    %v759 = vadd.f32 %v758, 1.0
    %v760 = vmul.f32 %v759, 0.5
    %v761 = vmul.f32 %v760, %v729
    %763 = vrot.lane.b32.xlu0 %v758, 64
    %v764 = vpop.permute.xlu0 %763
    %v766 = vmul.f32 %v760, %v764
    %768 = vrot.lane.b32.xlu0 %v766, 32
    %v769 = vpop.permute.xlu0 %768
    %v771 = vadd.f32 %v761, %v769
    %v772 = vtanh.pop %v771
    %774 = vrot.lane.b32.xlu0 %v772, 64
    %v775 = vpop.permute.xlu0 %774
    %v777 = vmul.f32 %v760, %v775
    %v778 = vld [vmem:[#allocation2 + $0x30] sm:$0xff]
    %v779 = vpack.c.bf16 %v777, %v777
    %781 = vrot.lane.b32.xlu0 %v779, 32
    %v782 = vpop.permute.xlu0 %781
    %v784 = vsel %vm656, %v782, 0
    %786 = vmatpush.bf16.msra.mxu0 0
    %787 = vmatpush.bf16.msra.mxu0 0
    %788 = vmatpush.bf16.msra.mxu0 0
    %789 = vmatpush.bf16.msra.mxu0 0
    %790 = vmatpush.bf16.msra.mxu0 0
    %791 = vmatpush.bf16.msra.mxu0 0
    %792 = vmatpush.bf16.msra.mxu0 %v653
    %793 = vmatpush.bf16.msra.mxu0 %v652
    %794 = vmatmul.bf16.gmra.mxu0 %v784
    %v795 = vpop.f32.mrf.mxu0
    %v796 = vadd.f32 0.0, %v795
    %v797 = vpop.f32.mrf.mxu0
    %798 = vdwg.mxu0
    %v799 = vadd.f32 %v778, %v796
    %v800 = vtanh.pop %v799
    %v801 = vadd.f32 %v800, 1.0
    %v802 = vmul.f32 %v801, 0.5
    %v803 = vmul.f32 %v802, %v771
    %805 = vrot.lane.b32.xlu0 %v800, 64
    %v806 = vpop.permute.xlu0 %805
    %v808 = vmul.f32 %v802, %v806
    %810 = vrot.lane.b32.xlu0 %v808, 32
    %v811 = vpop.permute.xlu0 %810
    %v813 = vadd.f32 %v803, %v811
    %v814 = vtanh.pop %v813
    %816 = vrot.lane.b32.xlu0 %v814, 64
    %v817 = vpop.permute.xlu0 %816
    %v819 = vmul.f32 %v802, %v817
    %v820 = vld [vmem:[#allocation2 + $0x40] sm:$0xff]
    %v821 = vpack.c.bf16 %v819, %v819
    %823 = vrot.lane.b32.xlu0 %v821, 32
    %v824 = vpop.permute.xlu0 %823
    %v826 = vsel %vm656, %v824, 0
    %828 = vmatpush.bf16.msra.mxu0 0
    %829 = vmatpush.bf16.msra.mxu0 0
    %830 = vmatpush.bf16.msra.mxu0 0
    %831 = vmatpush.bf16.msra.mxu0 0
    %832 = vmatpush.bf16.msra.mxu0 0
    %833 = vmatpush.bf16.msra.mxu0 0
    %834 = vmatpush.bf16.msra.mxu0 %v653
    %835 = vmatpush.bf16.msra.mxu0 %v652
    %836 = vmatmul.bf16.gmra.mxu0 %v826
    %v837 = vpop.f32.mrf.mxu0
    %v838 = vadd.f32 0.0, %v837
    %v839 = vpop.f32.mrf.mxu0
    %840 = vdwg.mxu0
    %v841 = vadd.f32 %v820, %v838
    %v842 = vtanh.pop %v841
    %v843 = vadd.f32 %v842, 1.0
    %v844 = vmul.f32 %v843, 0.5
    %v845 = vmul.f32 %v844, %v813
    %847 = vrot.lane.b32.xlu0 %v842, 64
    %v848 = vpop.permute.xlu0 %847
    %v850 = vmul.f32 %v844, %v848
    %852 = vrot.lane.b32.xlu0 %v850, 32
    %v853 = vpop.permute.xlu0 %852
    %v855 = vadd.f32 %v845, %v853
    %v856 = vtanh.pop %v855
    %858 = vrot.lane.b32.xlu0 %v856, 64
    %v859 = vpop.permute.xlu0 %858
    %v861 = vmul.f32 %v844, %v859
    %v862 = vld [vmem:[#allocation2 + $0x50] sm:$0xff]
    %v863 = vpack.c.bf16 %v861, %v861
    %865 = vrot.lane.b32.xlu0 %v863, 32
    %v866 = vpop.permute.xlu0 %865
    %v868 = vsel %vm656, %v866, 0
    %870 = vmatpush.bf16.msra.mxu0 0
    %871 = vmatpush.bf16.msra.mxu0 0
    %872 = vmatpush.bf16.msra.mxu0 0
    %873 = vmatpush.bf16.msra.mxu0 0
    %874 = vmatpush.bf16.msra.mxu0 0
    %875 = vmatpush.bf16.msra.mxu0 0
    %876 = vmatpush.bf16.msra.mxu0 %v653
    %877 = vmatpush.bf16.msra.mxu0 %v652
    %878 = vmatmul.bf16.gmra.mxu0 %v868
    %v879 = vpop.f32.mrf.mxu0
    %v880 = vadd.f32 0.0, %v879
    %v881 = vpop.f32.mrf.mxu0
    %882 = vdwg.mxu0
    %v883 = vadd.f32 %v862, %v880
    %v884 = vtanh.pop %v883
    %v885 = vadd.f32 %v884, 1.0
    %v886 = vmul.f32 %v885, 0.5
    %v887 = vmul.f32 %v886, %v855
    %889 = vrot.lane.b32.xlu0 %v884, 64
    %v890 = vpop.permute.xlu0 %889
    %v892 = vmul.f32 %v886, %v890
    %894 = vrot.lane.b32.xlu0 %v892, 32
    %v895 = vpop.permute.xlu0 %894
    %v897 = vadd.f32 %v887, %v895
    %v898 = vtanh.pop %v897
    %900 = vrot.lane.b32.xlu0 %v898, 64
    %v901 = vpop.permute.xlu0 %900
    %v903 = vmul.f32 %v886, %v901
    %v904 = vld [vmem:[#allocation2 + $0x60] sm:$0xff]
    %v905 = vpack.c.bf16 %v903, %v903
    %907 = vrot.lane.b32.xlu0 %v905, 32
    %v908 = vpop.permute.xlu0 %907
    %v910 = vsel %vm656, %v908, 0
    %912 = vmatpush.bf16.msra.mxu0 0
    %913 = vmatpush.bf16.msra.mxu0 0
    %914 = vmatpush.bf16.msra.mxu0 0
    %915 = vmatpush.bf16.msra.mxu0 0
    %916 = vmatpush.bf16.msra.mxu0 0
    %917 = vmatpush.bf16.msra.mxu0 0
    %918 = vmatpush.bf16.msra.mxu0 %v653
    %919 = vmatpush.bf16.msra.mxu0 %v652
    %920 = vmatmul.bf16.gmra.mxu0 %v910
    %v921 = vpop.f32.mrf.mxu0
    %v922 = vadd.f32 0.0, %v921
    %v923 = vpop.f32.mrf.mxu0
    %924 = vdwg.mxu0
    %v925 = vadd.f32 %v904, %v922
    %v926 = vtanh.pop %v925
    %v927 = vadd.f32 %v926, 1.0
    %v928 = vmul.f32 %v927, 0.5
    %v929 = vmul.f32 %v928, %v897
    %931 = vrot.lane.b32.xlu0 %v926, 64
    %v932 = vpop.permute.xlu0 %931
    %v934 = vmul.f32 %v928, %v932
    %936 = vrot.lane.b32.xlu0 %v934, 32
    %v937 = vpop.permute.xlu0 %936
    %v939 = vadd.f32 %v929, %v937
    %v940 = vtanh.pop %v939
    %942 = vrot.lane.b32.xlu0 %v940, 64
    %v943 = vpop.permute.xlu0 %942
    %v945 = vmul.f32 %v928, %v943
    %v946 = vld [vmem:[#allocation2 + $0x70] sm:$0xff]
    %v947 = vpack.c.bf16 %v945, %v945
    %949 = vrot.lane.b32.xlu0 %v947, 32
    %v950 = vpop.permute.xlu0 %949
    %v952 = vsel %vm656, %v950, 0
    %954 = vmatpush.bf16.msra.mxu0 0
    %955 = vmatpush.bf16.msra.mxu0 0
    %956 = vmatpush.bf16.msra.mxu0 0
    %957 = vmatpush.bf16.msra.mxu0 0
    %958 = vmatpush.bf16.msra.mxu0 0
    %959 = vmatpush.bf16.msra.mxu0 0
    %960 = vmatpush.bf16.msra.mxu0 %v653
    %961 = vmatpush.bf16.msra.mxu0 %v652
    %962 = vmatmul.bf16.gmra.mxu0 %v952
    %v963 = vpop.f32.mrf.mxu0
    %v964 = vadd.f32 0.0, %v963
    %v965 = vpop.f32.mrf.mxu0
    %966 = vdwg.mxu0
    %v967 = vadd.f32 %v946, %v964
    %v968 = vtanh.pop %v967
    %v969 = vadd.f32 %v968, 1.0
    %v970 = vmul.f32 %v969, 0.5
    %v971 = vmul.f32 %v970, %v939
    %973 = vrot.lane.b32.xlu0 %v968, 64
    %v974 = vpop.permute.xlu0 %973
    %v976 = vmul.f32 %v970, %v974
    %978 = vrot.lane.b32.xlu0 %v976, 32
    %v979 = vpop.permute.xlu0 %978
    %v981 = vadd.f32 %v971, %v979
    %v982 = vtanh.pop %v981
    %984 = vrot.lane.b32.xlu0 %v982, 64
    %v985 = vpop.permute.xlu0 %984
    %v987 = vmul.f32 %v970, %v985
    %v988 = vld [vmem:[#allocation2 + $0x80] sm:$0xff]
    %v989 = vpack.c.bf16 %v987, %v987
    %991 = vrot.lane.b32.xlu0 %v989, 32
    %v992 = vpop.permute.xlu0 %991
    %v994 = vsel %vm656, %v992, 0
    %996 = vmatpush.bf16.msra.mxu0 0
    %997 = vmatpush.bf16.msra.mxu0 0
    %998 = vmatpush.bf16.msra.mxu0 0
    %999 = vmatpush.bf16.msra.mxu0 0
    %1000 = vmatpush.bf16.msra.mxu0 0
    %1001 = vmatpush.bf16.msra.mxu0 0
    %1002 = vmatpush.bf16.msra.mxu0 %v653
    %1003 = vmatpush.bf16.msra.mxu0 %v652
    %1004 = vmatmul.bf16.gmra.mxu0 %v994
    %v1005 = vpop.f32.mrf.mxu0
    %v1006 = vadd.f32 0.0, %v1005
    %v1007 = vpop.f32.mrf.mxu0
    %1008 = vdwg.mxu0
    %v1009 = vadd.f32 %v988, %v1006
    %v1010 = vtanh.pop %v1009
    %v1011 = vadd.f32 %v1010, 1.0
    %v1012 = vmul.f32 %v1011, 0.5
    %v1013 = vmul.f32 %v1012, %v981
    %1015 = vrot.lane.b32.xlu0 %v1010, 64
    %v1016 = vpop.permute.xlu0 %1015
    %v1018 = vmul.f32 %v1012, %v1016
    %1020 = vrot.lane.b32.xlu0 %v1018, 32
    %v1021 = vpop.permute.xlu0 %1020
    %v1023 = vadd.f32 %v1013, %v1021
    %v1024 = vtanh.pop %v1023
    %1026 = vrot.lane.b32.xlu0 %v1024, 64
    %v1027 = vpop.permute.xlu0 %1026
    %v1029 = vmul.f32 %v1012, %v1027
    %v1030 = vld [vmem:[#allocation2 + $0x90] sm:$0xff]
    %v1031 = vpack.c.bf16 %v1029, %v1029
    %1033 = vrot.lane.b32.xlu0 %v1031, 32
    %v1034 = vpop.permute.xlu0 %1033
    %v1036 = vsel %vm656, %v1034, 0
    %1038 = vmatpush.bf16.msra.mxu0 0
    %1039 = vmatpush.bf16.msra.mxu0 0
    %1040 = vmatpush.bf16.msra.mxu0 0
    %1041 = vmatpush.bf16.msra.mxu0 0
    %1042 = vmatpush.bf16.msra.mxu0 0
    %1043 = vmatpush.bf16.msra.mxu0 0
    %1044 = vmatpush.bf16.msra.mxu0 %v653
    %1045 = vmatpush.bf16.msra.mxu0 %v652
    %1046 = vmatmul.bf16.gmra.mxu0 %v1036
    %v1047 = vpop.f32.mrf.mxu0
    %v1048 = vadd.f32 0.0, %v1047
    %v1049 = vpop.f32.mrf.mxu0
    %1050 = vdwg.mxu0
    %v1051 = vadd.f32 %v1030, %v1048
    %v1052 = vtanh.pop %v1051
    %v1053 = vadd.f32 %v1052, 1.0
    %v1054 = vmul.f32 %v1053, 0.5
    %v1055 = vmul.f32 %v1054, %v1023
    %1057 = vrot.lane.b32.xlu0 %v1052, 64
    %v1058 = vpop.permute.xlu0 %1057
    %v1060 = vmul.f32 %v1054, %v1058
    %1062 = vrot.lane.b32.xlu0 %v1060, 32
    %v1063 = vpop.permute.xlu0 %1062
    %v1065 = vadd.f32 %v1055, %v1063
    %v1066 = vtanh.pop %v1065
    %1068 = vrot.lane.b32.xlu0 %v1066, 64
    %v1069 = vpop.permute.xlu0 %1068
    %v1071 = vmul.f32 %v1054, %v1069
    %v1072 = vld [vmem:[#allocation2 + $0x98] sm:$0xff]
    %v1073 = vtanh.pop %v1072
    %v1074 = vadd.f32 %v1073, 1.0
    %v1075 = vmul.f32 %v1074, 0.5
    %1077 = vrot.lane.b32.xlu0 %v1073, 64
    %v1078 = vpop.permute.xlu0 %1077
    %v1080 = vmul.f32 %v1075, %v1078
    %v1081 = vtanh.pop %v1080
    %1083 = vrot.lane.b32.xlu0 %v1081, 96
    %v1084 = vpop.permute.xlu0 %1083
    %v1086 = vmul.f32 %v1075, %v1084
    %v1087 = vlaneseq
    %v1088 = vshrl.u32 %v1087, 7
    %v1089 = vlaneseq
    %v1090 = vand.u32 %v1089, 127
    %v1091 = vmul.u32 %v1088, 3
    %vm1092 = vcmp.ge.s32.totalorder %v1090, %v1091
    %v1093 = vadd.s32 %v1088, 1
    %v1094 = vmul.u32 %v1093, 3
    %vm1095 = vcmp.lt.s32.totalorder %v1090, %v1094
    %vm1096 = vmand %vm1092, %vm1095
    %v1097 = vsel %vm1096, 0.33333334, 0.0
    %v1098 = vld [vmem:[%s7] sm:$0xff]
    %v1099 = vld [vmem:[%s7 + $0x8] sm:$0xff]
    %v1100 = vld [vmem:[%s7 + $0x10] sm:$0xff]
    %v1101 = vld [vmem:[%s7 + $0x18] sm:$0xff]
    %v1102 = vld [vmem:[%s7 + $0x20] sm:$0xff]
    %v1103 = vld [vmem:[%s7 + $0x28] sm:$0xff]
    %v1104 = vld [vmem:[%s7 + $0x30] sm:$0xff]
    %v1105 = vld [vmem:[%s7 + $0x38] sm:$0xff]
    %1107 = vrot.lane.b32.xlu0 %v1086, 32
    %v1108 = vpop.permute.xlu0 %1107
    %v1109 = vsel %vm656, %v1108, 0
    %1111 = vmatpush.msra.mxu0 0.0
    %1112 = vmatpush.msra.mxu0 0.0
    %1113 = vmatpush.msra.mxu0 0.0
    %1114 = vmatpush.msra.mxu0 0.0
    %1115 = vmatpush.msra.mxu0 0.0
    %1116 = vmatpush.msra.mxu0 0.0
    %1117 = vmatpush.msra.mxu0 0.0
    %1118 = vmatpush.msra.mxu0 0.0
    %1119 = vmatpush.msra.mxu0 0.0
    %1120 = vmatpush.msra.mxu0 0.0
    %1121 = vmatpush.msra.mxu0 0.0
    %1122 = vmatpush.msra.mxu0 0.0
    %1123 = vmatpush.msra.mxu0 %v1105
    %1124 = vmatpush.msra.mxu0 %v1104
    %1125 = vmatpush.msra.mxu0 %v1103
    %1126 = vmatpush.msra.mxu0 %v1102
    %1127 = vmatmul.f32.gmra.mxu0 %v1109
    %v1128 = vpop.f32.mrf.mxu0
    %v1129 = vadd.f32 0.0, %v1128
    %1130 = vdwg.mxu0
    %1132 = vrot.lane.b32.xlu0 %v1071, 32
    %v1133 = vpop.permute.xlu0 %1132
    %v1134 = vsel %vm656, %v1133, 0
    %1136 = vmatpush.msra.mxu0 0.0
    %1137 = vmatpush.msra.mxu0 0.0
    %1138 = vmatpush.msra.mxu0 0.0
    %1139 = vmatpush.msra.mxu0 0.0
    %1140 = vmatpush.msra.mxu0 0.0
    %1141 = vmatpush.msra.mxu0 0.0
    %1142 = vmatpush.msra.mxu0 0.0
    %1143 = vmatpush.msra.mxu0 0.0
    %1144 = vmatpush.msra.mxu0 0.0
    %1145 = vmatpush.msra.mxu0 0.0
    %1146 = vmatpush.msra.mxu0 0.0
    %1147 = vmatpush.msra.mxu0 0.0
    %1148 = vmatpush.msra.mxu0 %v1101
    %1149 = vmatpush.msra.mxu0 %v1100
    %1150 = vmatpush.msra.mxu0 %v1099
    %1151 = vmatpush.msra.mxu0 %v1098
    %1152 = vmatmul.f32.gmra.mxu0 %v1134
    %v1153 = vpop.f32.mrf.mxu0
    %v1154 = vadd.f32 %v1129, %v1153
    %1155 = vdwg.mxu0
    %v1156 = vld [vmem:[%s8] sm:$0x1]
    %v1158 = vperm.slane %v1156, 0
    %v1161 = vsel %vm408, %v1097, 0
    %1163 = vmatpush.msra.mxu0 0.0
    %1164 = vmatpush.msra.mxu0 0.0
    %1165 = vmatpush.msra.mxu0 0.0
    %1166 = vmatpush.msra.mxu0 0.0
    %1167 = vmatpush.msra.mxu0 0.0
    %1168 = vmatpush.msra.mxu0 0.0
    %1169 = vmatpush.msra.mxu0 0.0
    %1170 = vmatpush.msra.mxu0 0.0
    %1171 = vmatpush.msra.mxu0 0.0
    %1172 = vmatpush.msra.mxu0 0.0
    %1173 = vmatpush.msra.mxu0 0.0
    %1174 = vmatpush.msra.mxu0 0.0
    %1175 = vmatpush.msra.mxu0 0.0
    %1176 = vmatpush.msra.mxu0 0.0
    %1177 = vmatpush.msra.mxu0 0.0
    %1178 = vmatpush.msra.mxu0 %v1154
    %1179 = vmatmul.f32.gmra.mxu0 %v1161
    %v1180 = vpop.f32.mrf.mxu0
    %v1181 = vadd.f32 %v1158, %v1180
    %1182 = vdwg.mxu0
    %v1183 = vmax.f32 %v1181, 0.0
    %v1184 = vld [vmem:[%s9] sm:$0xff]
    %v1185 = vld [vmem:[%s9 + $0x8] sm:$0xff]
    %v1186 = vld [vmem:[%s9 + $0x10] sm:$0xff]
    %v1187 = vld [vmem:[%s9 + $0x18] sm:$0xff]
    %v1188 = vld [vmem:[%s9 + $0x20] sm:$0xff]
    %v1189 = vld [vmem:[%s9 + $0x28] sm:$0xff]
    %v1190 = vld [vmem:[%s9 + $0x30] sm:$0xff]
    %v1191 = vld [vmem:[%s9 + $0x38] sm:$0xff]
    %v1192 = vld [vmem:[%s9 + $0x40] sm:$0xff]
    %v1193 = vld [vmem:[%s9 + $0x48] sm:$0xff]
    %v1194 = vld [vmem:[%s9 + $0x50] sm:$0xff]
    %v1195 = vld [vmem:[%s9 + $0x58] sm:$0xff]
    %v1196 = vld [vmem:[%s9 + $0x60] sm:$0xff]
    %v1197 = vld [vmem:[%s9 + $0x68] sm:$0xff]
    %v1198 = vld [vmem:[%s9 + $0x70] sm:$0xff]
    %v1199 = vld [vmem:[%s9 + $0x78] sm:$0xff]
    %v1200 = vld [vmem:[%s10] sm:$0x1]
    %v1202 = vperm.slane %v1200, 0
    %1204 = vmatpush.msra.mxu0 %v1199
    %1205 = vmatpush.msra.mxu0 %v1198
    %1206 = vmatpush.msra.mxu0 %v1197
    %1207 = vmatpush.msra.mxu0 %v1196
    %1208 = vmatpush.msra.mxu0 %v1195
    %1209 = vmatpush.msra.mxu0 %v1194
    %1210 = vmatpush.msra.mxu0 %v1193
    %1211 = vmatpush.msra.mxu0 %v1192
    %1212 = vmatpush.msra.mxu0 %v1191
    %1213 = vmatpush.msra.mxu0 %v1190
    %1214 = vmatpush.msra.mxu0 %v1189
    %1215 = vmatpush.msra.mxu0 %v1188
    %1216 = vmatpush.msra.mxu0 %v1187
    %1217 = vmatpush.msra.mxu0 %v1186
    %1218 = vmatpush.msra.mxu0 %v1185
    %1219 = vmatpush.msra.mxu0 %v1184
    %1220 = vmatmul.f32.gmra.mxu0 %v1183
    %v1221 = vpop.f32.mrf.mxu0
    %v1222 = vadd.f32 %v1202, %v1221
    %1223 = vdwg.mxu0
    %vm1224 = vcmask 9216
    %v1225 = vsel %vm1224, %v1222, -inf
    %1226 = vmax.xlane.f32.xlu0 %v1225
    %v1227 = vpop.xlane.xlu0 %1226
    %v1228 = vsub.f32 %v1222, %v1227
    %v1229 = vmul.f32 %v1228, 1.442695
    %v1230 = vpow.pop %v1229
    %v1231 = vsel %vm1224, %v1230, 0.0
    %1232 = vadd.xlane.f32.xlu0 %v1231
    %v1233 = vpop.xlane.xlu0 %1232
    %v1234 = vrcp.pop %v1233
    %v1235 = vmul.f32 %v1233, %v1234
    %v1236 = vsub.f32 1.0, %v1235
    %v1237 = vmul.f32 %v1234, %v1236
    %v1238 = vadd.f32 %v1234, %v1237
    %vm1239 = vweird.f32 %v1233
    %vm1240 = vweird.f32 %v1234
    %vm1241 = vmor %vm1239, %vm1240
    %v1242 = vsel %vm1241, %v1234, %v1238
    %v1243 = vand.u32 2147483647, %v1233
    %vm1244 = vcmp.eq.f32.partialorder %v1243, 8.507059e+37
    %v1245 = vand.u32 %v1233, 2147483648
    %v1246 = vor.u32 1.1754944e-38, %v1245
    %v1247 = vsel %vm1244, %v1246, %v1242
    %v1248 = vmul.f32 %v1230, %v1247
    %1249 = vst.msk [vmem:[#allocation8] sm:$0x3] %vm1224, %v1248
    // Predicated region
    $region54: #{pretrain_net_forward.1} parent=1 // pred_check
      _
    $region55: #{pretrain_net_forward.1} parent=1 // pred_check_branch
      %1251 = sbr.rel (0) target = $region57
    $region56: #{pretrain_net_forward.1} parent=1 // pred_region
      %1253 = vsyncadd [#allocation4], 0
      %s1255 = sshll.u32 [#allocation8], 4
      %s1256 = int_to_ptr.vmem [resolvable:$true] %s1255
      %s1257 = sshll.u32 %s11, 4
      %s1258 = int_to_ptr.hbm [resolvable:$true] %s1257
      %1260 = dma.vmem_to_hbm [thread:$0]  %s1256, 32, %s1258, [#allocation4]
    $region57: #{pretrain_net_forward.1} parent=1 // pred_fallthru
      _
    // Predicated region
    $region58: #{pretrain_net_forward.1} parent=1 // pred_check
      _
    $region59: #{pretrain_net_forward.1} parent=1 // pred_check_branch
      %1262 = sbr.rel (0) target = $region61
    $region60: #{pretrain_net_forward.1} parent=1 // pred_region
      %1264 = dma.done [#allocation4], 32
    $region61: #{pretrain_net_forward.1} parent=1 // pred_fallthru
      _
    %1265 = vsyncpa [#allocation4], 1
    %1266 = vsyncpa [#allocation5], 1
    %1267 = vsyncpa [#allocation7], 1

</llo_original>
